<compile_context>
chip_gen: v6e
topology: v6e:2x2x1
jax: 0.10.0
libtpu: 0.0.40
codegen_flags: <defaults>
</compile_context>

<pallas_src>
import jax
import jax.numpy as jnp
from jax.experimental import pallas as pl
from jax.experimental.pallas import tpu as pltpu


# ----------------------------- Pallas kernels ------------------------------ #

def _pool_kernel(x_ref, qh_ref, rht_ref, wk_ref, bk_ref, wv_ref, bv_ref,
                 out_ref):
    """Attention pooling of x against the (pre-projected) latent query.

    x_ref:   (Bt, N, C)   tokens for Bt batch elements
    qh_ref:  (C, H)       scale * q folded into a block-diagonal selector
    rht_ref: (H, C)       head -> head_dim-lane expansion matrix
    wk/bk, wv/bv:         K / V projection weights
    out_ref: (Bt, C)      pooled latent (token 0) per batch element
    """
    Bt, N, C = x_ref.shape
    H = qh_ref.shape[1]

    x2 = x_ref[...].reshape(Bt * N, C)

    k = jnp.dot(x2, wk_ref[...], preferred_element_type=jnp.float32) + bk_ref[...]
    v = jnp.dot(x2, wv_ref[...], preferred_element_type=jnp.float32) + bv_ref[...]

    # Per-head scores for the single latent query:
    #   s[m, h] = scale * sum_d q[h*D + d] * k[m, h*D + d]
    # qh already contains scale * q masked per head, so this is one matmul.
    s = jnp.dot(k, qh_ref[...], preferred_element_type=jnp.float32)   # (Bt*N, H)

    # Softmax over the token axis N, independently per (batch, head).
    s3 = s.reshape(Bt, N, H)
    s3 = s3 - jnp.max(s3, axis=1, keepdims=True)
    p = jnp.exp(s3)
    denom = jnp.sum(p, axis=1, keepdims=True)
    p = p * pl.reciprocal(denom, approx=True)                         # (Bt, N, H)

    # Expand per-head probabilities across their head_dim lanes with one tiny
    # matmul, then contract against V with a VPU multiply + sublane reduce.
    p_exp = jnp.dot(p.reshape(Bt * N, H), rht_ref[...],
                    preferred_element_type=jnp.float32)               # (Bt*N, C)
    o = jnp.sum(p_exp.reshape(Bt, N, C) * v.reshape(Bt, N, C), axis=1)  # (Bt, C)

    out_ref[...] = o.astype(out_ref.dtype)


def _proj_mlp_kernel(pooled_ref, wp_ref, bp_ref, w1_ref, b1_ref, w2_ref,
                     b2_ref, out_ref):
    """proj -> (Identity norm) -> MLP (fc1, exact GELU, fc2) with residual."""
    y = (jnp.dot(pooled_ref[...], wp_ref[...],
                 preferred_element_type=jnp.float32) + bp_ref[...])
    h1 = (jnp.dot(y, w1_ref[...], preferred_element_type=jnp.float32)
          + b1_ref[...])
    h1 = jax.nn.gelu(h1, approximate=False)
    y2 = y + (jnp.dot(h1, w2_ref[...], preferred_element_type=jnp.float32)
              + b2_ref[...])
    out_ref[...] = y2.astype(out_ref.dtype)


# ------------------------------- wrapper ----------------------------------- #

def _largest_divisor_at_most(n: int, cap: int) -> int:
    for cand in range(min(cap, n), 0, -1):
        if n % cand == 0:
            return cand
    return 1


def _nbytes(*arrs) -> int:
    return int(sum(int(a.size) * a.dtype.itemsize for a in arrs))


def attention_pool_latent(x, params, *, num_heads: int, block_b: int = 8):
    """x: (B, N, C).  Returns (B, C) float32 (pool == 'token')."""
    B, N, C = x.shape
    head_dim = C // num_heads
    scale = head_dim ** -0.5
    Hm = params["w1"].shape[1]

    # ---- hoisted, batch-invariant latent-query projection (token 0 only) ---
    q0 = params["latent"][0, 0] @ params["wq"] + params["bq"][0]        # (C,)
    head_ids = jnp.arange(C, dtype=jnp.int32) // head_dim
    sel = (head_ids[:, None]
           == jnp.arange(num_heads, dtype=jnp.int32)[None, :]).astype(x.dtype)
    qh = (scale * q0).astype(x.dtype)[:, None] * sel                    # (C, H)
    rht = sel.T                                                         # (H, C)

    # ---- phase 1: attention pooling, Bt batch elements per grid step -------
    bt = _largest_divisor_at_most(B, block_b)
    itemsize = x.dtype.itemsize
    pool_vmem = (2 * bt * N * C * itemsize                # x (double-buffered)
                 + 2 * bt * C * 4                         # out
                 + 2 * _nbytes(qh, rht, params["wk"], params["bk"],
                               params["wv"], params["bv"])
                 + 6 * bt * N * C * 4)                    # f32 intermediates
    pool_vmem = int(min(64 * 1024 * 1024, max(16 * 1024 * 1024, 2 * pool_vmem)))
    # NOTE: weight BlockSpecs below have constant index_maps; Pallas fetches
    # them once (pipeline_mode=pl.Buffered(1) would also halve their VMEM, but
    # the two-phase split already keeps only Wk/Wv resident here).

    pooled = pl.pallas_call(
        _pool_kernel,
        out_shape=jax.ShapeDtypeStruct((B, C), jnp.float32),
        grid_spec=pltpu.PrefetchScalarGridSpec(
            num_scalar_prefetch=0,
            grid=(B // bt,),
            in_specs=[
                pl.BlockSpec((bt, N, C), lambda i: (i, 0, 0)),     # x
                pl.BlockSpec((C, num_heads), lambda i: (0, 0)),    # qh
                pl.BlockSpec((num_heads, C), lambda i: (0, 0)),    # rht
                pl.BlockSpec((C, C), lambda i: (0, 0)),            # wk
                pl.BlockSpec((1, C), lambda i: (0, 0)),            # bk
                pl.BlockSpec((C, C), lambda i: (0, 0)),            # wv
                pl.BlockSpec((1, C), lambda i: (0, 0)),            # bv
            ],
            out_specs=pl.BlockSpec((bt, C), lambda i: (i, 0)),
        ),
        compiler_params=pltpu.CompilerParams(
            dimension_semantics=("parallel",),
            vmem_limit_bytes=pool_vmem,
        ),
        cost_estimate=pl.CostEstimate(
            flops=int(4 * B * N * C * C + 4 * B * N * C * num_heads
                      + 4 * B * N * C),
            transcendentals=int(B * N * num_heads),
            bytes_accessed=int(_nbytes(x, qh, rht, params["wk"], params["bk"],
                                       params["wv"], params["bv"])
                               + B * C * 4),
        ),
    )(x, qh, rht, params["wk"], params["bk"], params["wv"], params["bv"])

    # ---- phase 2: proj + MLP on the whole pooled batch ----------------------
    bt2 = _largest_divisor_at_most(B, 256)
    proj_vmem = (2 * _nbytes(pooled)
                 + 2 * _nbytes(params["wp"], params["bp"], params["w1"],
                               params["b1"], params["w2"], params["b2"])
                 + 4 * bt2 * Hm * 4)
    proj_vmem = int(min(64 * 1024 * 1024, max(16 * 1024 * 1024, 2 * proj_vmem)))

    out = pl.pallas_call(
        _proj_mlp_kernel,
        out_shape=jax.ShapeDtypeStruct((B, C), jnp.float32),
        grid_spec=pltpu.PrefetchScalarGridSpec(
            num_scalar_prefetch=0,
            grid=(B // bt2,),
            in_specs=[
                pl.BlockSpec((bt2, C), lambda i: (i, 0)),          # pooled
                pl.BlockSpec((C, C), lambda i: (0, 0)),            # wp
                pl.BlockSpec((1, C), lambda i: (0, 0)),            # bp
                pl.BlockSpec((C, Hm), lambda i: (0, 0)),           # w1
                pl.BlockSpec((1, Hm), lambda i: (0, 0)),           # b1
                pl.BlockSpec((Hm, C), lambda i: (0, 0)),           # w2
                pl.BlockSpec((1, C), lambda i: (0, 0)),            # b2
            ],
            out_specs=pl.BlockSpec((bt2, C), lambda i: (i, 0)),
        ),
        compiler_params=pltpu.CompilerParams(
            dimension_semantics=("parallel",),
            vmem_limit_bytes=proj_vmem,
        ),
        cost_estimate=pl.CostEstimate(
            flops=int(2 * B * C * C + 4 * B * C * Hm + 4 * B * C),
            transcendentals=int(B * Hm),
            bytes_accessed=int(_nbytes(pooled, params["wp"], params["bp"],
                                       params["w1"], params["b1"],
                                       params["w2"], params["b2"])
                               + B * C * 4),
        ),
    )(pooled, params["wp"], params["bp"], params["w1"], params["b1"],
      params["w2"], params["b2"])

    return out


# ------------------------- pure-JAX reference ------------------------------ #

def attention_pool_latent_ref(x, params, *, num_heads: int):
    B, N, C = x.shape
    L = params["latent"].shape[1]
    D = C // num_heads
    scale = D ** -0.5

    lat = jnp.broadcast_to(params["latent"], (B, L, C))
    q = lat @ params["wq"] + params["bq"]                      # (B, L, C)
    k = x @ params["wk"] + params["bk"]                        # (B, N, C)
    v = x @ params["wv"] + params["bv"]                        # (B, N, C)

    q = q.reshape(B, L, num_heads, D).transpose(0, 2, 1, 3)    # (B, H, L, D)
    k = k.reshape(B, N, num_heads, D).transpose(0, 2, 1, 3)    # (B, H, N, D)
    v = v.reshape(B, N, num_heads, D).transpose(0, 2, 1, 3)    # (B, H, N, D)

    s = jnp.einsum("bhld,bhnd->bhln", q, k) * scale
    p = jax.nn.softmax(s, axis=-1)
    o = jnp.einsum("bhln,bhnd->bhld", p, v)                    # (B, H, L, D)
    o = o.transpose(0, 2, 1, 3).reshape(B, L, C)

    y = o @ params["wp"] + params["bp"]
    h1 = jax.nn.gelu(y @ params["w1"] + params["b1"], approximate=False)
    y2 = y + h1 @ params["w2"] + params["b2"]
    return y2[:, 0]


# --------------------------------- main ------------------------------------ #

if __name__ == "__main__":
    # Lane-dense config: C is a multiple of 128 so no masked partial stores.
    B, N, C = 16, 64, 128
    num_heads = 8                 # head_dim = 16
    latent_len = 1
    mlp_hidden = int(C * 4.0)     # 512

    key = jax.random.PRNGKey(0)
    keys = jax.random.split(key, 16)

    def init(k, shape, s=0.05):
        return (s * jax.random.normal(k, shape)).astype(jnp.float32)

    params = {
        # Latent/Wq scaled up so the softmax is meaningfully non-uniform and
        # the test actually exercises the attention path.
        "latent": init(keys[0], (1, latent_len, C), s=1.0),
        # Linear weights stored pre-transposed (in_features, out_features),
        # biases stored as (1, out_features).  The module's fused kv Linear is
        # represented as separate (wk, bk) / (wv, bv) halves (equivalent).
        "wq": init(keys[1], (C, C), s=0.5), "bq": init(keys[2], (1, C)),
        "wk": init(keys[3], (C, C)), "bk": init(keys[4], (1, C)),
        "wv": init(keys[5], (C, C)), "bv": init(keys[6], (1, C)),
        "wp": init(keys[7], (C, C)), "bp": init(keys[8], (1, C)),
        "w1": init(keys[9], (C, mlp_hidden)), "b1": init(keys[10], (1, mlp_hidden)),
        "w2": init(keys[11], (mlp_hidden, C)), "b2": init(keys[12], (1, C)),
    }

    x = jax.random.normal(keys[13], (B, N, C), dtype=jnp.float32)

    out = attention_pool_latent(x, params, num_heads=num_heads)
    out = jax.block_until_ready(out)

    ref = attention_pool_latent_ref(x, params, num_heads=num_heads)
    assert out.shape == (B, C), out.shape
    err = float(jnp.max(jnp.abs(out - ref)))
    # Tolerance accounts for the approximate-reciprocal softmax denominator
    # and MXU f32 accumulation order; real bugs produce errors >> 1e-2 here.
    assert err < 2e-3, err

    print("KERNEL_OK")
</pallas_src>

<mosaic_0001>
module attributes {stable_mosaic.version = 11 : i64} {
  func.func @_pool_kernel(%arg0: i32, %arg1: memref<8x64x128xf32, #tpu.memory_space<vmem>>, %arg2: memref<128x8xf32, #tpu.memory_space<vmem>>, %arg3: memref<8x128xf32, #tpu.memory_space<vmem>>, %arg4: memref<128x128xf32, #tpu.memory_space<vmem>>, %arg5: memref<1x128xf32, #tpu.memory_space<vmem>>, %arg6: memref<128x128xf32, #tpu.memory_space<vmem>>, %arg7: memref<1x128xf32, #tpu.memory_space<vmem>>, %arg8: memref<8x128xf32, #tpu.memory_space<vmem>>) attributes {dimension_semantics = [#tpu.dimension_semantics<parallel>], iteration_bounds = array<i64: 2>, scalar_prefetch = 0 : i64, scratch_operands = 0 : i64, tpu.core_type = #tpu.core_type<tc>, window_params = [{transform_indices = @transform_0, window_bounds = array<i64: 8, 64, 128>}, {pipeline_mode = #tpu.pipeline_mode<synchronous>, transform_indices = @transform_1, window_bounds = array<i64: 128, 8>}, {pipeline_mode = #tpu.pipeline_mode<synchronous>, transform_indices = @transform_2, window_bounds = array<i64: 8, 128>}, {pipeline_mode = #tpu.pipeline_mode<synchronous>, transform_indices = @transform_3, window_bounds = array<i64: 128, 128>}, {pipeline_mode = #tpu.pipeline_mode<synchronous>, transform_indices = @transform_4, window_bounds = array<i64: 1, 128>}, {pipeline_mode = #tpu.pipeline_mode<synchronous>, transform_indices = @transform_5, window_bounds = array<i64: 128, 128>}, {pipeline_mode = #tpu.pipeline_mode<synchronous>, transform_indices = @transform_6, window_bounds = array<i64: 1, 128>}, {transform_indices = @transform_7, window_bounds = array<i64: 8, 128>}]} {
    %c0 = arith.constant 0 : index
    %c0_0 = arith.constant 0 : index
    %c0_1 = arith.constant 0 : index
    %0 = vector.load %arg1[%c0, %c0_0, %c0_1] : memref<8x64x128xf32, #tpu.memory_space<vmem>>, vector<8x64x128xf32>
    %1 = vector.shape_cast %0 : vector<8x64x128xf32> to vector<512x128xf32>
    %c0_2 = arith.constant 0 : index
    %c0_3 = arith.constant 0 : index
    %2 = vector.load %arg4[%c0_2, %c0_3] : memref<128x128xf32, #tpu.memory_space<vmem>>, vector<128x128xf32>
    %cst = arith.constant dense<0.000000e+00> : vector<512x128xf32>
    %3 = tpu.matmul %1, %2, %cst {dimension_numbers = #tpu.dot_dimension_numbers<[1], [0], [0], [1], [0, 0, 1, 1], [], []>} : vector<512x128xf32>, vector<128x128xf32>, vector<512x128xf32> -> vector<512x128xf32>
    %c0_4 = arith.constant 0 : index
    %c0_5 = arith.constant 0 : index
    %4 = vector.load %arg5[%c0_4, %c0_5] : memref<1x128xf32, #tpu.memory_space<vmem>>, vector<1x128xf32>
    %5 = vector.broadcast %4 : vector<1x128xf32> to vector<512x128xf32>
    %6 = arith.addf %3, %5 : vector<512x128xf32>
    %c0_6 = arith.constant 0 : index
    %c0_7 = arith.constant 0 : index
    %7 = vector.load %arg6[%c0_6, %c0_7] : memref<128x128xf32, #tpu.memory_space<vmem>>, vector<128x128xf32>
    %cst_8 = arith.constant dense<0.000000e+00> : vector<512x128xf32>
    %8 = tpu.matmul %1, %7, %cst_8 {dimension_numbers = #tpu.dot_dimension_numbers<[1], [0], [0], [1], [0, 0, 1, 1], [], []>} : vector<512x128xf32>, vector<128x128xf32>, vector<512x128xf32> -> vector<512x128xf32>
    %c0_9 = arith.constant 0 : index
    %c0_10 = arith.constant 0 : index
    %9 = vector.load %arg7[%c0_9, %c0_10] : memref<1x128xf32, #tpu.memory_space<vmem>>, vector<1x128xf32>
    %10 = vector.broadcast %9 : vector<1x128xf32> to vector<512x128xf32>
    %11 = arith.addf %8, %10 : vector<512x128xf32>
    %c0_11 = arith.constant 0 : index
    %c0_12 = arith.constant 0 : index
    %12 = vector.load %arg2[%c0_11, %c0_12] : memref<128x8xf32, #tpu.memory_space<vmem>>, vector<128x8xf32>
    %cst_13 = arith.constant dense<0.000000e+00> : vector<512x8xf32>
    %13 = tpu.matmul %6, %12, %cst_13 {dimension_numbers = #tpu.dot_dimension_numbers<[1], [0], [0], [1], [0, 0, 1, 1], [], []>} : vector<512x128xf32>, vector<128x8xf32>, vector<512x8xf32> -> vector<512x8xf32>
    %14 = vector.shape_cast %13 : vector<512x8xf32> to vector<8x64x8xf32>
    %cst_14 = arith.constant dense<0xFF800000> : vector<8x8xf32>
    %15 = vector.multi_reduction <maximumf>, %14, %cst_14 [1] : vector<8x64x8xf32> to vector<8x8xf32>
    %16 = vector.shape_cast %15 : vector<8x8xf32> to vector<8x1x8xf32>
    %17 = vector.broadcast %16 : vector<8x1x8xf32> to vector<8x64x8xf32>
    %18 = arith.subf %14, %17 : vector<8x64x8xf32>
    %19 = math.exp %18 : vector<8x64x8xf32>
    %cst_15 = arith.constant dense<0.000000e+00> : vector<8x8xf32>
    %20 = vector.multi_reduction <add>, %19, %cst_15 [1] : vector<8x64x8xf32> to vector<8x8xf32>
    %21 = vector.shape_cast %20 : vector<8x8xf32> to vector<8x1x8xf32>
    %22 = tpu.reciprocal %21 {approx = true} : vector<8x1x8xf32> -> vector<8x1x8xf32>
    %23 = vector.broadcast %22 : vector<8x1x8xf32> to vector<8x64x8xf32>
    %24 = arith.mulf %19, %23 : vector<8x64x8xf32>
    %25 = vector.shape_cast %24 : vector<8x64x8xf32> to vector<512x8xf32>
    %c0_16 = arith.constant 0 : index
    %c0_17 = arith.constant 0 : index
    %26 = vector.load %arg3[%c0_16, %c0_17] : memref<8x128xf32, #tpu.memory_space<vmem>>, vector<8x128xf32>
    %cst_18 = arith.constant dense<0.000000e+00> : vector<512x128xf32>
    %27 = tpu.matmul %25, %26, %cst_18 {dimension_numbers = #tpu.dot_dimension_numbers<[1], [0], [0], [1], [0, 0, 1, 1], [], []>} : vector<512x8xf32>, vector<8x128xf32>, vector<512x128xf32> -> vector<512x128xf32>
    %28 = vector.shape_cast %27 : vector<512x128xf32> to vector<8x64x128xf32>
    %29 = vector.shape_cast %11 : vector<512x128xf32> to vector<8x64x128xf32>
    %30 = arith.mulf %28, %29 : vector<8x64x128xf32>
    %cst_19 = arith.constant dense<0.000000e+00> : vector<8x128xf32>
    %31 = vector.multi_reduction <add>, %30, %cst_19 [1] : vector<8x64x128xf32> to vector<8x128xf32>
    %c0_20 = arith.constant 0 : index
    %c0_21 = arith.constant 0 : index
    %32 = vector.load %arg8[%c0_20, %c0_21] : memref<8x128xf32, #tpu.memory_space<vmem>>, vector<8x128xf32>
    tpu.vector_store %arg8[%c0_20, %c0_21], %31 {strides = array<i32>} : memref<8x128xf32, #tpu.memory_space<vmem>>, vector<8x128xf32>,
    return
  }
  func.func @transform_0(%arg0: i32) -> (i32, i32, i32) {
    %c0_i32 = arith.constant 0 : i32
    %c0_i32_0 = arith.constant 0 : i32
    %c0_i32_1 = arith.constant 0 : i32
    return %arg0, %c0_i32, %c0_i32_0 : i32, i32, i32
  }
  func.func @transform_1(%arg0: i32) -> (i32, i32) {
    %c0_i32 = arith.constant 0 : i32
    %c0_i32_0 = arith.constant 0 : i32
    %c0_i32_1 = arith.constant 0 : i32
    return %c0_i32, %c0_i32_0 : i32, i32
  }
  func.func @transform_2(%arg0: i32) -> (i32, i32) {
    %c0_i32 = arith.constant 0 : i32
    %c0_i32_0 = arith.constant 0 : i32
    %c0_i32_1 = arith.constant 0 : i32
    return %c0_i32, %c0_i32_0 : i32, i32
  }
  func.func @transform_3(%arg0: i32) -> (i32, i32) {
    %c0_i32 = arith.constant 0 : i32
    %c0_i32_0 = arith.constant 0 : i32
    %c0_i32_1 = arith.constant 0 : i32
    return %c0_i32, %c0_i32_0 : i32, i32
  }
  func.func @transform_4(%arg0: i32) -> (i32, i32) {
    %c0_i32 = arith.constant 0 : i32
    %c0_i32_0 = arith.constant 0 : i32
    %c0_i32_1 = arith.constant 0 : i32
    return %c0_i32, %c0_i32_0 : i32, i32
  }
  func.func @transform_5(%arg0: i32) -> (i32, i32) {
    %c0_i32 = arith.constant 0 : i32
    %c0_i32_0 = arith.constant 0 : i32
    %c0_i32_1 = arith.constant 0 : i32
    return %c0_i32, %c0_i32_0 : i32, i32
  }
  func.func @transform_6(%arg0: i32) -> (i32, i32) {
    %c0_i32 = arith.constant 0 : i32
    %c0_i32_0 = arith.constant 0 : i32
    %c0_i32_1 = arith.constant 0 : i32
    return %c0_i32, %c0_i32_0 : i32, i32
  }
  func.func @transform_7(%arg0: i32) -> (i32, i32) {
    %c0_i32 = arith.constant 0 : i32
    %c0_i32_0 = arith.constant 0 : i32
    return %arg0, %c0_i32 : i32, i32
  }
}

</mosaic_0001>

<llo_original>
// kernel: tpu_custom_call.1
$region0: #{tpu_custom_call.1}
  #allocation0 [shape = 'u32[]', space=smem, size = 0x4, offset = 0x4, fixed_abs, tag = 'smem constant byte address 0x4 - core index']
  #allocation1 [shape = 'u32[144,128]{1,0:T(1,128)}', space=vmem, size = 0x12000, scoped, tag = 'internal scratch']
  %s0 = inlined_call_operand.hbm [shape: f32[16,64,128], index: 0, kind: input, shape index: {}]
  %s1 = inlined_call_operand.vmem [shape: f32[128,8], index: 1, kind: input, shape index: {}]
  %s2 = inlined_call_operand.vmem [shape: f32[8,128], index: 2, kind: input, shape index: {}]
  %s3 = inlined_call_operand.vmem [shape: f32[128,128], index: 3, kind: input, shape index: {}]
  %s4 = inlined_call_operand.vmem [shape: f32[1,128], index: 4, kind: input, shape index: {}]
  %s5 = inlined_call_operand.hbm [shape: f32[128,128], index: 5, kind: input, shape index: {}]
  %s6 = inlined_call_operand.vmem [shape: f32[1,128], index: 6, kind: input, shape index: {}]
  %s7 = inlined_call_operand.hbm [shape: f32[16,128], index: 7, kind: output, shape index: {}]
  %s8 = sld [smem:[#allocation0]]
  $region69: #{tpu_custom_call.1} parent=0
    _
  %s10 = ssub.s32 1, %s8
  %s11 = scalar_select 0, %s10, %s8
  $region1: #{tpu_custom_call.1} parent=0
    #allocation2 [shape = 'u8[524288]{0}', space=vmem, size = 0x80000, scoped, tag = 'input window, operand 0']
    #allocation3 [shape = 's32[2]{0}', space=sflag, size = 0x8, scoped, tag = 'scoped memory for tpu_custom_call.1']
    #allocation4 [shape = 's32[2]{0}', space=sflag, size = 0x8, scoped, tag = 'scoped memory for tpu_custom_call.1']
    #allocation5 [shape = 'u8[65536]{0}', space=vmem, size = 0x10000, scoped, tag = 'input window, operand 5, single buffered']
    #allocation6 [shape = 's32[1]{0}', space=sflag, size = 0x4, scoped, tag = 'scoped memory for tpu_custom_call.1']
    #allocation7 [shape = 'u8[8192]{0}', space=vmem, size = 0x2000, scoped, tag = 'output window, operand 0']
    %12 = vsyncpa [#allocation3], 0
    %s13 = scalar_lea.sflag [#allocation3], 1
    %14 = vsyncpa %s13, 0
    %15 = vsyncpa [#allocation6], 0
    %16 = vsyncpa [#allocation4], 0
    %s17 = scalar_lea.sflag [#allocation4], 1
    %18 = vsyncpa %s17, 0
    loop: start=0, step=1, limit=4
    $region2: #{tpu_custom_call.1} parent=1 // loop_pre_header
      _
    $region3: #{tpu_custom_call.1} parent=1 // loop_header
      %s20 = sphi 0, %s24
      %p21 = scmp.ge.s32.totalorder %s20, 4
      %s30 = sphi 0, %s32
      %s33 = sphi 0, %s30
      %s34 = sphi 0, %s33
      %s50 = sphi 0, %s34
      %s54 = sphi 0, %s54
      %s56 = sphi 0, %s54
      %s57 = sphi 0, %s56
      %s71 = sphi 0, %s57
      %s75 = sphi 0, %s75
      %s77 = sphi 0, %s75
      %s78 = sphi 0, %s77
      %s92 = sphi 0, %s78
      %s96 = sphi 0, %s96
      %s98 = sphi 0, %s96
      %s99 = sphi 0, %s98
      %s113 = sphi 0, %s99
      %s117 = sphi 0, %s117
      %s119 = sphi 0, %s117
      %s120 = sphi 0, %s119
      %s134 = sphi 0, %s120
      %s138 = sphi 0, %s138
      %s140 = sphi 0, %s138
      %s141 = sphi 0, %s140
      %s155 = sphi 0, %s141
      %s159 = sphi 0, %s159
      %s161 = sphi 0, %s159
      %s162 = sphi 0, %s161
      %s176 = sphi 0, %s162
      %s182 = sphi 0, %s184
      %s185 = sphi 0, %s182
      %s186 = sphi 0, %s185
      %s202 = sphi 0, %s186
    $region4: #{tpu_custom_call.1} parent=1 // loop_header_branch
      %23 = sbr.rel (%p21) target = $region8
    $region5: #{tpu_custom_call.1} parent=1 // loop_body
      %s25 = ssub.s32 %s20, 1
      %s26 = ssub.s32 %s20, 2
      %s27 = sadd.s32 %s20, 1
      %s28 = ssub.s32 %s20, %s27
      %p29 = scmp.eq.s32.totalorder %s28, 0
      %s31 = sadd.s32 %s30, 1
      %s32 = scalar_select %p29, %s30, %s31
      %p35 = pneg %p29
      %p36 = scmp.eq.s32.totalorder %s20, 1
      %p37 = por %p35, %p36
      %p38 = scmp.ne.s32.totalorder %s30, %s33
      %p39 = scmp.eq.s32.totalorder %s20, 0
      %p40 = por %p38, %p39
      %p41 = scmp.ne.s32.totalorder %s30, %s33
      %p42 = scmp.eq.s32.totalorder %s25, 1
      %p43 = por %p41, %p42
      %p44 = scmp.ne.s32.totalorder %s33, %s34
      %p45 = scmp.eq.s32.totalorder %s25, 0
      %p46 = por %p44, %p45
      %p47 = scmp.ne.s32.totalorder %s33, %s34
      %p48 = scmp.eq.s32.totalorder %s26, 1
      %p49 = por %p47, %p48
      %p51 = scmp.ne.s32.totalorder %s34, %s50
      %p52 = scmp.eq.s32.totalorder %s26, 0
      %p53 = por %p51, %p52
      %s55 = sadd.s32 %s54, 1
      %p58 = scmp.eq.s32.totalorder %s20, 1
      %p59 = scmp.ne.s32.totalorder %s54, %s56
      %p60 = scmp.eq.s32.totalorder %s20, 0
      %p61 = por %p59, %p60
      %p62 = scmp.ne.s32.totalorder %s54, %s56
      %p63 = scmp.eq.s32.totalorder %s25, 1
      %p64 = por %p62, %p63
      %p65 = scmp.ne.s32.totalorder %s56, %s57
      %p66 = scmp.eq.s32.totalorder %s25, 0
      %p67 = por %p65, %p66
      %p68 = scmp.ne.s32.totalorder %s56, %s57
      %p69 = scmp.eq.s32.totalorder %s26, 1
      %p70 = por %p68, %p69
      %p72 = scmp.ne.s32.totalorder %s57, %s71
      %p73 = scmp.eq.s32.totalorder %s26, 0
      %p74 = por %p72, %p73
      %s76 = sadd.s32 %s75, 1
      %p79 = scmp.eq.s32.totalorder %s20, 1
      %p80 = scmp.ne.s32.totalorder %s75, %s77
      %p81 = scmp.eq.s32.totalorder %s20, 0
      %p82 = por %p80, %p81
      %p83 = scmp.ne.s32.totalorder %s75, %s77
      %p84 = scmp.eq.s32.totalorder %s25, 1
      %p85 = por %p83, %p84
      %p86 = scmp.ne.s32.totalorder %s77, %s78
      %p87 = scmp.eq.s32.totalorder %s25, 0
      %p88 = por %p86, %p87
      %p89 = scmp.ne.s32.totalorder %s77, %s78
      %p90 = scmp.eq.s32.totalorder %s26, 1
      %p91 = por %p89, %p90
      %p93 = scmp.ne.s32.totalorder %s78, %s92
      %p94 = scmp.eq.s32.totalorder %s26, 0
      %p95 = por %p93, %p94
      %s97 = sadd.s32 %s96, 1
      %p100 = scmp.eq.s32.totalorder %s20, 1
      %p101 = scmp.ne.s32.totalorder %s96, %s98
      %p102 = scmp.eq.s32.totalorder %s20, 0
      %p103 = por %p101, %p102
      %p104 = scmp.ne.s32.totalorder %s96, %s98
      %p105 = scmp.eq.s32.totalorder %s25, 1
      %p106 = por %p104, %p105
      %p107 = scmp.ne.s32.totalorder %s98, %s99
      %p108 = scmp.eq.s32.totalorder %s25, 0
      %p109 = por %p107, %p108
      %p110 = scmp.ne.s32.totalorder %s98, %s99
      %p111 = scmp.eq.s32.totalorder %s26, 1
      %p112 = por %p110, %p111
      %p114 = scmp.ne.s32.totalorder %s99, %s113
      %p115 = scmp.eq.s32.totalorder %s26, 0
      %p116 = por %p114, %p115
      %s118 = sadd.s32 %s117, 1
      %p121 = scmp.eq.s32.totalorder %s20, 1
      %p122 = scmp.ne.s32.totalorder %s117, %s119
      %p123 = scmp.eq.s32.totalorder %s20, 0
      %p124 = por %p122, %p123
      %p125 = scmp.ne.s32.totalorder %s117, %s119
      %p126 = scmp.eq.s32.totalorder %s25, 1
      %p127 = por %p125, %p126
      %p128 = scmp.ne.s32.totalorder %s119, %s120
      %p129 = scmp.eq.s32.totalorder %s25, 0
      %p130 = por %p128, %p129
      %p131 = scmp.ne.s32.totalorder %s119, %s120
      %p132 = scmp.eq.s32.totalorder %s26, 1
      %p133 = por %p131, %p132
      %p135 = scmp.ne.s32.totalorder %s120, %s134
      %p136 = scmp.eq.s32.totalorder %s26, 0
      %p137 = por %p135, %p136
      %s139 = sadd.s32 %s138, 1
      %p142 = scmp.eq.s32.totalorder %s20, 1
      %p143 = scmp.ne.s32.totalorder %s138, %s140
      %p144 = scmp.eq.s32.totalorder %s20, 0
      %p145 = por %p143, %p144
      %p146 = scmp.ne.s32.totalorder %s138, %s140
      %p147 = scmp.eq.s32.totalorder %s25, 1
      %p148 = por %p146, %p147
      %p149 = scmp.ne.s32.totalorder %s140, %s141
      %p150 = scmp.eq.s32.totalorder %s25, 0
      %p151 = por %p149, %p150
      %p152 = scmp.ne.s32.totalorder %s140, %s141
      %p153 = scmp.eq.s32.totalorder %s26, 1
      %p154 = por %p152, %p153
      %p156 = scmp.ne.s32.totalorder %s141, %s155
      %p157 = scmp.eq.s32.totalorder %s26, 0
      %p158 = por %p156, %p157
      %s160 = sadd.s32 %s159, 1
      %p163 = scmp.eq.s32.totalorder %s20, 1
      %p164 = scmp.ne.s32.totalorder %s159, %s161
      %p165 = scmp.eq.s32.totalorder %s20, 0
      %p166 = por %p164, %p165
      %p167 = scmp.ne.s32.totalorder %s159, %s161
      %p168 = scmp.eq.s32.totalorder %s25, 1
      %p169 = por %p167, %p168
      %p170 = scmp.ne.s32.totalorder %s161, %s162
      %p171 = scmp.eq.s32.totalorder %s25, 0
      %p172 = por %p170, %p171
      %p173 = scmp.ne.s32.totalorder %s161, %s162
      %p174 = scmp.eq.s32.totalorder %s26, 1
      %p175 = por %p173, %p174
      %p177 = scmp.ne.s32.totalorder %s162, %s176
      %p178 = scmp.eq.s32.totalorder %s26, 0
      %p179 = por %p177, %p178
      %s180 = ssub.s32 %s20, %s27
      %p181 = scmp.eq.s32.totalorder %s180, 0
      %s183 = sadd.s32 %s182, 1
      %s184 = scalar_select %p181, %s182, %s183
      %p187 = pneg %p181
      %p188 = scmp.eq.s32.totalorder %s20, 1
      %p189 = por %p187, %p188
      %p190 = scmp.ne.s32.totalorder %s182, %s185
      %p191 = scmp.eq.s32.totalorder %s20, 0
      %p192 = por %p190, %p191
      %p193 = scmp.ne.s32.totalorder %s182, %s185
      %p194 = scmp.eq.s32.totalorder %s25, 1
      %p195 = por %p193, %p194
      %p196 = scmp.ne.s32.totalorder %s185, %s186
      %p197 = scmp.eq.s32.totalorder %s25, 0
      %p198 = por %p196, %p197
      %p199 = scmp.ne.s32.totalorder %s185, %s186
      %p200 = scmp.eq.s32.totalorder %s26, 1
      %p201 = por %p199, %p200
      %p203 = scmp.ne.s32.totalorder %s186, %s202
      %p204 = scmp.eq.s32.totalorder %s26, 0
      %p205 = por %p203, %p204
      %p206 = scmp.le.s32.totalorder 1, %s20
      %p207 = scmp.lt.s32.totalorder %s20, 3
      %p208 = pnand %p206, %p207
      %p209 = pneg %p208
      // Predicated region
      $region9: #{tpu_custom_call.1} parent=5 // pred_check
        _
      $region10: #{tpu_custom_call.1} parent=5 // pred_check_branch
        %211 = sbr.rel (%p208) target = $region12
      $region11: #{tpu_custom_call.1} parent=5 // pred_region
        %s212 = ssub.s32 %s20, 1
        // Predicated region
        $region13: #{tpu_custom_call.1} parent=11 // pred_check
          %p213 = pneg %p67
        $region14: #{tpu_custom_call.1} parent=11 // pred_check_branch
          %215 = sbr.rel (%p213) target = $region16
        $region15: #{tpu_custom_call.1} parent=11 // pred_region
          _
        $region16: #{tpu_custom_call.1} parent=11 // pred_fallthru
          _
        // Predicated region
        $region17: #{tpu_custom_call.1} parent=11 // pred_check
          %p216 = pneg %p88
        $region18: #{tpu_custom_call.1} parent=11 // pred_check_branch
          %218 = sbr.rel (%p216) target = $region20
        $region19: #{tpu_custom_call.1} parent=11 // pred_region
          _
        $region20: #{tpu_custom_call.1} parent=11 // pred_fallthru
          _
        // Predicated region
        $region21: #{tpu_custom_call.1} parent=11 // pred_check
          %p219 = pneg %p109
        $region22: #{tpu_custom_call.1} parent=11 // pred_check_branch
          %221 = sbr.rel (%p219) target = $region24
        $region23: #{tpu_custom_call.1} parent=11 // pred_region
          _
        $region24: #{tpu_custom_call.1} parent=11 // pred_fallthru
          _
        // Predicated region
        $region25: #{tpu_custom_call.1} parent=11 // pred_check
          %p222 = pneg %p130
        $region26: #{tpu_custom_call.1} parent=11 // pred_check_branch
          %224 = sbr.rel (%p222) target = $region28
        $region27: #{tpu_custom_call.1} parent=11 // pred_region
          _
        $region28: #{tpu_custom_call.1} parent=11 // pred_fallthru
          _
        // Predicated region
        $region29: #{tpu_custom_call.1} parent=11 // pred_check
          %p225 = pneg %p151
        $region30: #{tpu_custom_call.1} parent=11 // pred_check_branch
          %227 = sbr.rel (%p225) target = $region32
        $region31: #{tpu_custom_call.1} parent=11 // pred_region
          %s229 = ssub.s32 2048, 2048
          %230 = vsyncadd [#allocation6], %s229
          %s231 = sshll.u32 [#allocation5], 4
          %s232 = int_to_ptr.vmem [resolvable:$true] %s231
          %237 = dma.hbm_to_vmem [thread:$0]  %s5, 2048, %s232, [#allocation6], 128, 128, 8
        $region32: #{tpu_custom_call.1} parent=11 // pred_fallthru
          _
        // Predicated region
        $region33: #{tpu_custom_call.1} parent=11 // pred_check
          %p238 = pneg %p172
        $region34: #{tpu_custom_call.1} parent=11 // pred_check_branch
          %240 = sbr.rel (%p238) target = $region36
        $region35: #{tpu_custom_call.1} parent=11 // pred_region
          _
        $region36: #{tpu_custom_call.1} parent=11 // pred_fallthru
          _
      $region12: #{tpu_custom_call.1} parent=5 // pred_fallthru
        _
      %p241 = scmp.lt.s32.totalorder %s20, 2
      // Predicated region
      $region37: #{tpu_custom_call.1} parent=5 // pred_check
        %p242 = pneg %p241
      $region38: #{tpu_custom_call.1} parent=5 // pred_check_branch
        %244 = sbr.rel (%p242) target = $region40
      $region39: #{tpu_custom_call.1} parent=5 // pred_region
        // Predicated region
        $region41: #{tpu_custom_call.1} parent=39 // pred_check
          %p245 = pneg %p40
        $region42: #{tpu_custom_call.1} parent=39 // pred_check_branch
          %247 = sbr.rel (%p245) target = $region44
        $region43: #{tpu_custom_call.1} parent=39 // pred_region
          %s248 = sand.u32 %s30, 1
          %s249 = scalar_lea.sflag [#allocation3], %s248
          %s250 = sand.u32 %s30, 1
          %s251 = smul.addr %s250, 512
          %s252 = scalar_lea.vmem [#allocation2], %s251
          %s253 = smul.u32 8, %s20
          %s255 = ssub.s32 8192, 8192
          %256 = vsyncadd %s249, %s255
          %s257 = smul.addr %s253, 8
          %s258 = smul.addr %s257, 128
          %s259 = scalar_lea.hbm %s0, %s258
          %s260 = sshll.u32 %s252, 4
          %s261 = int_to_ptr.vmem [resolvable:$true] %s260
          %266 = dma.hbm_to_vmem [thread:$0]  %s259, 8192, %s261, %s249, 128, 128, 8
        $region44: #{tpu_custom_call.1} parent=39 // pred_fallthru
          _
      $region40: #{tpu_custom_call.1} parent=5 // pred_fallthru
        _
      %p267 = scmp.le.s32.totalorder 1, %s20
      %p268 = scmp.lt.s32.totalorder %s20, 3
      %p269 = pnand %p267, %p268
      %p270 = pneg %p269
      // Predicated region
      $region45: #{tpu_custom_call.1} parent=5 // pred_check
        _
      $region46: #{tpu_custom_call.1} parent=5 // pred_check_branch
        %272 = sbr.rel (%p269) target = $region48
      $region47: #{tpu_custom_call.1} parent=5 // pred_region
        %s273 = ssub.s32 %s20, 1
        %s274 = sand.u32 %s33, 1
        %s275 = scalar_lea.sflag [#allocation3], %s274
        %s276 = sand.u32 %s33, 1
        %s277 = smul.addr %s276, 512
        %s278 = scalar_lea.vmem [#allocation2], %s277
        // Predicated region
        $region49: #{tpu_custom_call.1} parent=47 // pred_check
          %p279 = pneg %p46
        $region50: #{tpu_custom_call.1} parent=47 // pred_check_branch
          %281 = sbr.rel (%p279) target = $region52
        $region51: #{tpu_custom_call.1} parent=47 // pred_region
          %282 = dma.done %s275, 8192
        $region52: #{tpu_custom_call.1} parent=47 // pred_fallthru
          _
        // Predicated region
        $region53: #{tpu_custom_call.1} parent=47 // pred_check
          %p283 = pneg %p151
        $region54: #{tpu_custom_call.1} parent=47 // pred_check_branch
          %285 = sbr.rel (%p283) target = $region56
        $region55: #{tpu_custom_call.1} parent=47 // pred_region
          %286 = dma.done [#allocation6], 2048
        $region56: #{tpu_custom_call.1} parent=47 // pred_fallthru
          _
        %s287 = sand.u32 %s33, 1
        %s288 = scalar_lea.sflag [#allocation3], %s287
        %s289 = sand.u32 %s33, 1
        %s290 = smul.addr %s289, 512
        %s291 = scalar_lea.vmem [#allocation2], %s290
        %p292 = pneg %p46
        %p293 = pneg %p43
        %p294 = pneg %p67
        %p295 = pneg %p64
        %p296 = pneg %p88
        %p297 = pneg %p85
        %p298 = pneg %p109
        %p299 = pneg %p106
        %p300 = pneg %p130
        %p301 = pneg %p127
        %p302 = pneg %p151
        %p303 = pneg %p148
        %p304 = pneg %p172
        %p305 = pneg %p169
        %p306 = pneg %p198
        %p307 = pneg %p195
        %s308 = sand.u32 %s185, 1
        %s309 = scalar_lea.sflag [#allocation4], %s308
        %s310 = sand.u32 %s185, 1
        %s311 = smul.addr %s310, 8
        %s312 = scalar_lea.vmem [#allocation7], %s311
        %s313 = smul.u32 8, %s25
        %v314 = vld [vmem:[%s278] sm:$0xff]
        %v315 = vld [vmem:[%s278 + $0x8] sm:$0xff]
        %v316 = vld [vmem:[%s278 + $0x10] sm:$0xff]
        %v317 = vld [vmem:[%s278 + $0x18] sm:$0xff]
        %v318 = vld [vmem:[%s278 + $0x20] sm:$0xff]
        %v319 = vld [vmem:[%s278 + $0x28] sm:$0xff]
        %v320 = vld [vmem:[%s278 + $0x30] sm:$0xff]
        %v321 = vld [vmem:[%s278 + $0x38] sm:$0xff]
        %v322 = vld [vmem:[%s278 + $0x40] sm:$0xff]
        %v323 = vld [vmem:[%s278 + $0x48] sm:$0xff]
        %v324 = vld [vmem:[%s278 + $0x50] sm:$0xff]
        %v325 = vld [vmem:[%s278 + $0x58] sm:$0xff]
        %v326 = vld [vmem:[%s278 + $0x60] sm:$0xff]
        %v327 = vld [vmem:[%s278 + $0x68] sm:$0xff]
        %v328 = vld [vmem:[%s278 + $0x70] sm:$0xff]
        %v329 = vld [vmem:[%s278 + $0x78] sm:$0xff]
        %v330 = vld [vmem:[%s278 + $0x80] sm:$0xff]
        %v331 = vld [vmem:[%s278 + $0x88] sm:$0xff]
        %v332 = vld [vmem:[%s278 + $0x90] sm:$0xff]
        %v333 = vld [vmem:[%s278 + $0x98] sm:$0xff]
        %v334 = vld [vmem:[%s278 + $0xa0] sm:$0xff]
        %v335 = vld [vmem:[%s278 + $0xa8] sm:$0xff]
        %v336 = vld [vmem:[%s278 + $0xb0] sm:$0xff]
        %v337 = vld [vmem:[%s278 + $0xb8] sm:$0xff]
        %v338 = vld [vmem:[%s278 + $0xc0] sm:$0xff]
        %v339 = vld [vmem:[%s278 + $0xc8] sm:$0xff]
        %v340 = vld [vmem:[%s278 + $0xd0] sm:$0xff]
        %v341 = vld [vmem:[%s278 + $0xd8] sm:$0xff]
        %v342 = vld [vmem:[%s278 + $0xe0] sm:$0xff]
        %v343 = vld [vmem:[%s278 + $0xe8] sm:$0xff]
        %v344 = vld [vmem:[%s278 + $0xf0] sm:$0xff]
        %v345 = vld [vmem:[%s278 + $0xf8] sm:$0xff]
        %v346 = vld [vmem:[%s278 + $0x100] sm:$0xff]
        %v347 = vld [vmem:[%s278 + $0x108] sm:$0xff]
        %v348 = vld [vmem:[%s278 + $0x110] sm:$0xff]
        %v349 = vld [vmem:[%s278 + $0x118] sm:$0xff]
        %v350 = vld [vmem:[%s278 + $0x120] sm:$0xff]
        %v351 = vld [vmem:[%s278 + $0x128] sm:$0xff]
        %v352 = vld [vmem:[%s278 + $0x130] sm:$0xff]
        %v353 = vld [vmem:[%s278 + $0x138] sm:$0xff]
        %v354 = vld [vmem:[%s278 + $0x140] sm:$0xff]
        %v355 = vld [vmem:[%s278 + $0x148] sm:$0xff]
        %v356 = vld [vmem:[%s278 + $0x150] sm:$0xff]
        %v357 = vld [vmem:[%s278 + $0x158] sm:$0xff]
        %v358 = vld [vmem:[%s278 + $0x160] sm:$0xff]
        %v359 = vld [vmem:[%s278 + $0x168] sm:$0xff]
        %v360 = vld [vmem:[%s278 + $0x170] sm:$0xff]
        %v361 = vld [vmem:[%s278 + $0x178] sm:$0xff]
        %v362 = vld [vmem:[%s278 + $0x180] sm:$0xff]
        %v363 = vld [vmem:[%s278 + $0x188] sm:$0xff]
        %v364 = vld [vmem:[%s278 + $0x190] sm:$0xff]
        %v365 = vld [vmem:[%s278 + $0x198] sm:$0xff]
        %v366 = vld [vmem:[%s278 + $0x1a0] sm:$0xff]
        %v367 = vld [vmem:[%s278 + $0x1a8] sm:$0xff]
        %v368 = vld [vmem:[%s278 + $0x1b0] sm:$0xff]
        %v369 = vld [vmem:[%s278 + $0x1b8] sm:$0xff]
        %v370 = vld [vmem:[%s278 + $0x1c0] sm:$0xff]
        %v371 = vld [vmem:[%s278 + $0x1c8] sm:$0xff]
        %v372 = vld [vmem:[%s278 + $0x1d0] sm:$0xff]
        %v373 = vld [vmem:[%s278 + $0x1d8] sm:$0xff]
        %v374 = vld [vmem:[%s278 + $0x1e0] sm:$0xff]
        %v375 = vld [vmem:[%s278 + $0x1e8] sm:$0xff]
        %v376 = vld [vmem:[%s278 + $0x1f0] sm:$0xff]
        %v377 = vld [vmem:[%s278 + $0x1f8] sm:$0xff]
        %v378 = vld [vmem:[%s3] sm:$0xff]
        %v379 = vld [vmem:[%s3 + $0x8] sm:$0xff]
        %v380 = vld [vmem:[%s3 + $0x10] sm:$0xff]
        %v381 = vld [vmem:[%s3 + $0x18] sm:$0xff]
        %v382 = vld [vmem:[%s3 + $0x20] sm:$0xff]
        %v383 = vld [vmem:[%s3 + $0x28] sm:$0xff]
        %v384 = vld [vmem:[%s3 + $0x30] sm:$0xff]
        %v385 = vld [vmem:[%s3 + $0x38] sm:$0xff]
        %v386 = vld [vmem:[%s3 + $0x40] sm:$0xff]
        %v387 = vld [vmem:[%s3 + $0x48] sm:$0xff]
        %v388 = vld [vmem:[%s3 + $0x50] sm:$0xff]
        %v389 = vld [vmem:[%s3 + $0x58] sm:$0xff]
        %v390 = vld [vmem:[%s3 + $0x60] sm:$0xff]
        %v391 = vld [vmem:[%s3 + $0x68] sm:$0xff]
        %v392 = vld [vmem:[%s3 + $0x70] sm:$0xff]
        %v393 = vld [vmem:[%s3 + $0x78] sm:$0xff]
        %v394 = vld [vmem:[%s4] sm:$0x1]
        %v396 = vlaneseq
        %v397 = vshrl.u32 %v396, 7
        %v398 = vsub.s32 0, %v397
        %v399 = vrot.slane %v394, %v398
        %401 = vmatprep.subr.mxu0 0.0
        %402 = vmatpush1.msra.mxu0 %v393
        %403 = vmatprep.subr.mxu0 0.0
        %404 = vmatpush1.msra.mxu0 %v392
        %405 = vmatprep.subr.mxu0 0.0
        %406 = vmatpush1.msra.mxu0 %v391
        %407 = vmatprep.subr.mxu0 0.0
        %408 = vmatpush1.msra.mxu0 %v390
        %409 = vmatprep.subr.mxu0 0.0
        %410 = vmatpush1.msra.mxu0 %v389
        %411 = vmatprep.subr.mxu0 0.0
        %412 = vmatpush1.msra.mxu0 %v388
        %413 = vmatprep.subr.mxu0 0.0
        %414 = vmatpush1.msra.mxu0 %v387
        %415 = vmatprep.subr.mxu0 0.0
        %416 = vmatpush1.msra.mxu0 %v386
        %417 = vmatprep.subr.mxu0 0.0
        %418 = vmatpush1.msra.mxu0 %v385
        %419 = vmatprep.subr.mxu0 0.0
        %420 = vmatpush1.msra.mxu0 %v384
        %421 = vmatprep.subr.mxu0 0.0
        %422 = vmatpush1.msra.mxu0 %v383
        %423 = vmatprep.subr.mxu0 0.0
        %424 = vmatpush1.msra.mxu0 %v382
        %425 = vmatprep.subr.mxu0 0.0
        %426 = vmatpush1.msra.mxu0 %v381
        %427 = vmatprep.subr.mxu0 0.0
        %428 = vmatpush1.msra.mxu0 %v380
        %429 = vmatprep.subr.mxu0 0.0
        %430 = vmatpush1.msra.mxu0 %v379
        %431 = vmatprep.subr.mxu0 0.0
        %432 = vmatpush1.msra.mxu0 %v378
        %433 = vmatprep.subr.mxu0 0.0
        %434 = vmatpush2.msra.mxu0 0.0
        %435 = vmatprep.subr.mxu0 0.0
        %436 = vmatpush2.msra.mxu0 0.0
        %437 = vmatprep.subr.mxu0 0.0
        %438 = vmatpush2.msra.mxu0 0.0
        %439 = vmatprep.subr.mxu0 0.0
        %440 = vmatpush2.msra.mxu0 0.0
        %441 = vmatprep.subr.mxu0 0.0
        %442 = vmatpush2.msra.mxu0 0.0
        %443 = vmatprep.subr.mxu0 0.0
        %444 = vmatpush2.msra.mxu0 0.0
        %445 = vmatprep.subr.mxu0 0.0
        %446 = vmatpush2.msra.mxu0 0.0
        %447 = vmatprep.subr.mxu0 0.0
        %448 = vmatpush2.msra.mxu0 0.0
        %449 = vmatprep.subr.mxu0 0.0
        %450 = vmatpush2.msra.mxu0 0.0
        %451 = vmatprep.subr.mxu0 0.0
        %452 = vmatpush2.msra.mxu0 0.0
        %453 = vmatprep.subr.mxu0 0.0
        %454 = vmatpush2.msra.mxu0 0.0
        %455 = vmatprep.subr.mxu0 0.0
        %456 = vmatpush2.msra.mxu0 0.0
        %457 = vmatprep.subr.mxu0 0.0
        %458 = vmatpush2.msra.mxu0 0.0
        %459 = vmatprep.subr.mxu0 0.0
        %460 = vmatpush2.msra.mxu0 0.0
        %461 = vmatprep.subr.mxu0 0.0
        %462 = vmatpush2.msra.mxu0 0.0
        %463 = vmatprep.subr.mxu0 0.0
        %464 = vmatpush2.msra.mxu0 0.0
        %465 = vmatprep.mubr.f32.mxu0 0.0
        %466 = vmatmul.mubr.f32.gmra.mxu0 %v314
        %v467 = vpop.f32.mrf.mxu0
        %v468 = vadd.f32 %v399, %v467
        %v469 = vpop.f32.mrf.mxu0
        %470 = vmatprep.mubr.f32.mxu0 0.0
        %471 = vmatmul.mubr.f32.gmra.mxu0 %v315
        %v472 = vpop.f32.mrf.mxu0
        %v473 = vadd.f32 %v399, %v472
        %v474 = vpop.f32.mrf.mxu0
        %475 = vmatprep.mubr.f32.mxu0 0.0
        %476 = vmatmul.mubr.f32.gmra.mxu0 %v316
        %v477 = vpop.f32.mrf.mxu0
        %v478 = vadd.f32 %v399, %v477
        %v479 = vpop.f32.mrf.mxu0
        %480 = vmatprep.mubr.f32.mxu0 0.0
        %481 = vmatmul.mubr.f32.gmra.mxu0 %v317
        %v482 = vpop.f32.mrf.mxu0
        %v483 = vadd.f32 %v399, %v482
        %v484 = vpop.f32.mrf.mxu0
        %485 = vmatprep.mubr.f32.mxu0 0.0
        %486 = vmatmul.mubr.f32.gmra.mxu0 %v318
        %v487 = vpop.f32.mrf.mxu0
        %v488 = vadd.f32 %v399, %v487
        %v489 = vpop.f32.mrf.mxu0
        %490 = vmatprep.mubr.f32.mxu0 0.0
        %491 = vmatmul.mubr.f32.gmra.mxu0 %v319
        %v492 = vpop.f32.mrf.mxu0
        %v493 = vadd.f32 %v399, %v492
        %v494 = vpop.f32.mrf.mxu0
        %495 = vmatprep.mubr.f32.mxu0 0.0
        %496 = vmatmul.mubr.f32.gmra.mxu0 %v320
        %v497 = vpop.f32.mrf.mxu0
        %v498 = vadd.f32 %v399, %v497
        %v499 = vpop.f32.mrf.mxu0
        %500 = vmatprep.mubr.f32.mxu0 0.0
        %501 = vmatmul.mubr.f32.gmra.mxu0 %v321
        %v502 = vpop.f32.mrf.mxu0
        %v503 = vadd.f32 %v399, %v502
        %v504 = vpop.f32.mrf.mxu0
        %505 = vmatprep.mubr.f32.mxu0 0.0
        %506 = vmatmul.mubr.f32.gmra.mxu0 %v322
        %v507 = vpop.f32.mrf.mxu0
        %v508 = vadd.f32 %v399, %v507
        %v509 = vpop.f32.mrf.mxu0
        %510 = vmatprep.mubr.f32.mxu0 0.0
        %511 = vmatmul.mubr.f32.gmra.mxu0 %v323
        %v512 = vpop.f32.mrf.mxu0
        %v513 = vadd.f32 %v399, %v512
        %v514 = vpop.f32.mrf.mxu0
        %515 = vmatprep.mubr.f32.mxu0 0.0
        %516 = vmatmul.mubr.f32.gmra.mxu0 %v324
        %v517 = vpop.f32.mrf.mxu0
        %v518 = vadd.f32 %v399, %v517
        %v519 = vpop.f32.mrf.mxu0
        %520 = vmatprep.mubr.f32.mxu0 0.0
        %521 = vmatmul.mubr.f32.gmra.mxu0 %v325
        %v522 = vpop.f32.mrf.mxu0
        %v523 = vadd.f32 %v399, %v522
        %v524 = vpop.f32.mrf.mxu0
        %525 = vmatprep.mubr.f32.mxu0 0.0
        %526 = vmatmul.mubr.f32.gmra.mxu0 %v326
        %v527 = vpop.f32.mrf.mxu0
        %v528 = vadd.f32 %v399, %v527
        %v529 = vpop.f32.mrf.mxu0
        %530 = vmatprep.mubr.f32.mxu0 0.0
        %531 = vmatmul.mubr.f32.gmra.mxu0 %v327
        %v532 = vpop.f32.mrf.mxu0
        %v533 = vadd.f32 %v399, %v532
        %v534 = vpop.f32.mrf.mxu0
        %535 = vmatprep.mubr.f32.mxu0 0.0
        %536 = vmatmul.mubr.f32.gmra.mxu0 %v328
        %v537 = vpop.f32.mrf.mxu0
        %v538 = vadd.f32 %v399, %v537
        %v539 = vpop.f32.mrf.mxu0
        %540 = vmatprep.mubr.f32.mxu0 0.0
        %541 = vmatmul.mubr.f32.gmra.mxu0 %v329
        %v542 = vpop.f32.mrf.mxu0
        %v543 = vadd.f32 %v399, %v542
        %v544 = vpop.f32.mrf.mxu0
        %545 = vmatprep.mubr.f32.mxu0 0.0
        %546 = vmatmul.mubr.f32.gmra.mxu0 %v330
        %v547 = vpop.f32.mrf.mxu0
        %v548 = vadd.f32 %v399, %v547
        %v549 = vpop.f32.mrf.mxu0
        %550 = vmatprep.mubr.f32.mxu0 0.0
        %551 = vmatmul.mubr.f32.gmra.mxu0 %v331
        %v552 = vpop.f32.mrf.mxu0
        %v553 = vadd.f32 %v399, %v552
        %v554 = vpop.f32.mrf.mxu0
        %555 = vmatprep.mubr.f32.mxu0 0.0
        %556 = vmatmul.mubr.f32.gmra.mxu0 %v332
        %v557 = vpop.f32.mrf.mxu0
        %v558 = vadd.f32 %v399, %v557
        %v559 = vpop.f32.mrf.mxu0
        %560 = vmatprep.mubr.f32.mxu0 0.0
        %561 = vmatmul.mubr.f32.gmra.mxu0 %v333
        %v562 = vpop.f32.mrf.mxu0
        %v563 = vadd.f32 %v399, %v562
        %v564 = vpop.f32.mrf.mxu0
        %565 = vmatprep.mubr.f32.mxu0 0.0
        %566 = vmatmul.mubr.f32.gmra.mxu0 %v334
        %v567 = vpop.f32.mrf.mxu0
        %v568 = vadd.f32 %v399, %v567
        %v569 = vpop.f32.mrf.mxu0
        %570 = vmatprep.mubr.f32.mxu0 0.0
        %571 = vmatmul.mubr.f32.gmra.mxu0 %v335
        %v572 = vpop.f32.mrf.mxu0
        %v573 = vadd.f32 %v399, %v572
        %v574 = vpop.f32.mrf.mxu0
        %575 = vmatprep.mubr.f32.mxu0 0.0
        %576 = vmatmul.mubr.f32.gmra.mxu0 %v336
        %v577 = vpop.f32.mrf.mxu0
        %v578 = vadd.f32 %v399, %v577
        %v579 = vpop.f32.mrf.mxu0
        %580 = vmatprep.mubr.f32.mxu0 0.0
        %581 = vmatmul.mubr.f32.gmra.mxu0 %v337
        %v582 = vpop.f32.mrf.mxu0
        %v583 = vadd.f32 %v399, %v582
        %v584 = vpop.f32.mrf.mxu0
        %585 = vmatprep.mubr.f32.mxu0 0.0
        %586 = vmatmul.mubr.f32.gmra.mxu0 %v338
        %v587 = vpop.f32.mrf.mxu0
        %v588 = vadd.f32 %v399, %v587
        %v589 = vpop.f32.mrf.mxu0
        %590 = vmatprep.mubr.f32.mxu0 0.0
        %591 = vmatmul.mubr.f32.gmra.mxu0 %v339
        %v592 = vpop.f32.mrf.mxu0
        %v593 = vadd.f32 %v399, %v592
        %v594 = vpop.f32.mrf.mxu0
        %595 = vmatprep.mubr.f32.mxu0 0.0
        %596 = vmatmul.mubr.f32.gmra.mxu0 %v340
        %v597 = vpop.f32.mrf.mxu0
        %v598 = vadd.f32 %v399, %v597
        %v599 = vpop.f32.mrf.mxu0
        %600 = vmatprep.mubr.f32.mxu0 0.0
        %601 = vmatmul.mubr.f32.gmra.mxu0 %v341
        %v602 = vpop.f32.mrf.mxu0
        %v603 = vadd.f32 %v399, %v602
        %v604 = vpop.f32.mrf.mxu0
        %605 = vmatprep.mubr.f32.mxu0 0.0
        %606 = vmatmul.mubr.f32.gmra.mxu0 %v342
        %v607 = vpop.f32.mrf.mxu0
        %v608 = vadd.f32 %v399, %v607
        %v609 = vpop.f32.mrf.mxu0
        %610 = vmatprep.mubr.f32.mxu0 0.0
        %611 = vmatmul.mubr.f32.gmra.mxu0 %v343
        %v612 = vpop.f32.mrf.mxu0
        %v613 = vadd.f32 %v399, %v612
        %v614 = vpop.f32.mrf.mxu0
        %615 = vmatprep.mubr.f32.mxu0 0.0
        %616 = vmatmul.mubr.f32.gmra.mxu0 %v344
        %v617 = vpop.f32.mrf.mxu0
        %v618 = vadd.f32 %v399, %v617
        %v619 = vpop.f32.mrf.mxu0
        %620 = vmatprep.mubr.f32.mxu0 0.0
        %621 = vmatmul.mubr.f32.gmra.mxu0 %v345
        %v622 = vpop.f32.mrf.mxu0
        %v623 = vadd.f32 %v399, %v622
        %v624 = vpop.f32.mrf.mxu0
        %625 = vmatprep.mubr.f32.mxu0 0.0
        %626 = vmatmul.mubr.f32.gmra.mxu0 %v346
        %v627 = vpop.f32.mrf.mxu0
        %v628 = vadd.f32 %v399, %v627
        %v629 = vpop.f32.mrf.mxu0
        %630 = vmatprep.mubr.f32.mxu0 0.0
        %631 = vmatmul.mubr.f32.gmra.mxu0 %v347
        %v632 = vpop.f32.mrf.mxu0
        %v633 = vadd.f32 %v399, %v632
        %v634 = vpop.f32.mrf.mxu0
        %635 = vmatprep.mubr.f32.mxu0 0.0
        %636 = vmatmul.mubr.f32.gmra.mxu0 %v348
        %v637 = vpop.f32.mrf.mxu0
        %v638 = vadd.f32 %v399, %v637
        %v639 = vpop.f32.mrf.mxu0
        %640 = vmatprep.mubr.f32.mxu0 0.0
        %641 = vmatmul.mubr.f32.gmra.mxu0 %v349
        %v642 = vpop.f32.mrf.mxu0
        %v643 = vadd.f32 %v399, %v642
        %v644 = vpop.f32.mrf.mxu0
        %645 = vmatprep.mubr.f32.mxu0 0.0
        %646 = vmatmul.mubr.f32.gmra.mxu0 %v350
        %v647 = vpop.f32.mrf.mxu0
        %v648 = vadd.f32 %v399, %v647
        %v649 = vpop.f32.mrf.mxu0
        %650 = vmatprep.mubr.f32.mxu0 0.0
        %651 = vmatmul.mubr.f32.gmra.mxu0 %v351
        %v652 = vpop.f32.mrf.mxu0
        %v653 = vadd.f32 %v399, %v652
        %v654 = vpop.f32.mrf.mxu0
        %655 = vmatprep.mubr.f32.mxu0 0.0
        %656 = vmatmul.mubr.f32.gmra.mxu0 %v352
        %v657 = vpop.f32.mrf.mxu0
        %v658 = vadd.f32 %v399, %v657
        %v659 = vpop.f32.mrf.mxu0
        %660 = vmatprep.mubr.f32.mxu0 0.0
        %661 = vmatmul.mubr.f32.gmra.mxu0 %v353
        %v662 = vpop.f32.mrf.mxu0
        %v663 = vadd.f32 %v399, %v662
        %v664 = vpop.f32.mrf.mxu0
        %665 = vmatprep.mubr.f32.mxu0 0.0
        %666 = vmatmul.mubr.f32.gmra.mxu0 %v354
        %v667 = vpop.f32.mrf.mxu0
        %v668 = vadd.f32 %v399, %v667
        %v669 = vpop.f32.mrf.mxu0
        %670 = vmatprep.mubr.f32.mxu0 0.0
        %671 = vmatmul.mubr.f32.gmra.mxu0 %v355
        %v672 = vpop.f32.mrf.mxu0
        %v673 = vadd.f32 %v399, %v672
        %v674 = vpop.f32.mrf.mxu0
        %675 = vmatprep.mubr.f32.mxu0 0.0
        %676 = vmatmul.mubr.f32.gmra.mxu0 %v356
        %v677 = vpop.f32.mrf.mxu0
        %v678 = vadd.f32 %v399, %v677
        %v679 = vpop.f32.mrf.mxu0
        %680 = vmatprep.mubr.f32.mxu0 0.0
        %681 = vmatmul.mubr.f32.gmra.mxu0 %v357
        %v682 = vpop.f32.mrf.mxu0
        %v683 = vadd.f32 %v399, %v682
        %v684 = vpop.f32.mrf.mxu0
        %685 = vmatprep.mubr.f32.mxu0 0.0
        %686 = vmatmul.mubr.f32.gmra.mxu0 %v358
        %v687 = vpop.f32.mrf.mxu0
        %v688 = vadd.f32 %v399, %v687
        %v689 = vpop.f32.mrf.mxu0
        %690 = vmatprep.mubr.f32.mxu0 0.0
        %691 = vmatmul.mubr.f32.gmra.mxu0 %v359
        %v692 = vpop.f32.mrf.mxu0
        %v693 = vadd.f32 %v399, %v692
        %v694 = vpop.f32.mrf.mxu0
        %695 = vmatprep.mubr.f32.mxu0 0.0
        %696 = vmatmul.mubr.f32.gmra.mxu0 %v360
        %v697 = vpop.f32.mrf.mxu0
        %v698 = vadd.f32 %v399, %v697
        %v699 = vpop.f32.mrf.mxu0
        %700 = vmatprep.mubr.f32.mxu0 0.0
        %701 = vmatmul.mubr.f32.gmra.mxu0 %v361
        %v702 = vpop.f32.mrf.mxu0
        %v703 = vadd.f32 %v399, %v702
        %v704 = vpop.f32.mrf.mxu0
        %705 = vmatprep.mubr.f32.mxu0 0.0
        %706 = vmatmul.mubr.f32.gmra.mxu0 %v362
        %v707 = vpop.f32.mrf.mxu0
        %v708 = vadd.f32 %v399, %v707
        %v709 = vpop.f32.mrf.mxu0
        %710 = vmatprep.mubr.f32.mxu0 0.0
        %711 = vmatmul.mubr.f32.gmra.mxu0 %v363
        %v712 = vpop.f32.mrf.mxu0
        %v713 = vadd.f32 %v399, %v712
        %v714 = vpop.f32.mrf.mxu0
        %715 = vmatprep.mubr.f32.mxu0 0.0
        %716 = vmatmul.mubr.f32.gmra.mxu0 %v364
        %v717 = vpop.f32.mrf.mxu0
        %v718 = vadd.f32 %v399, %v717
        %v719 = vpop.f32.mrf.mxu0
        %720 = vmatprep.mubr.f32.mxu0 0.0
        %721 = vmatmul.mubr.f32.gmra.mxu0 %v365
        %v722 = vpop.f32.mrf.mxu0
        %v723 = vadd.f32 %v399, %v722
        %v724 = vpop.f32.mrf.mxu0
        %725 = vmatprep.mubr.f32.mxu0 0.0
        %726 = vmatmul.mubr.f32.gmra.mxu0 %v366
        %v727 = vpop.f32.mrf.mxu0
        %v728 = vadd.f32 %v399, %v727
        %v729 = vpop.f32.mrf.mxu0
        %730 = vmatprep.mubr.f32.mxu0 0.0
        %731 = vmatmul.mubr.f32.gmra.mxu0 %v367
        %v732 = vpop.f32.mrf.mxu0
        %v733 = vadd.f32 %v399, %v732
        %v734 = vpop.f32.mrf.mxu0
        %735 = vmatprep.mubr.f32.mxu0 0.0
        %736 = vmatmul.mubr.f32.gmra.mxu0 %v368
        %v737 = vpop.f32.mrf.mxu0
        %v738 = vadd.f32 %v399, %v737
        %v739 = vpop.f32.mrf.mxu0
        %740 = vmatprep.mubr.f32.mxu0 0.0
        %741 = vmatmul.mubr.f32.gmra.mxu0 %v369
        %v742 = vpop.f32.mrf.mxu0
        %v743 = vadd.f32 %v399, %v742
        %v744 = vpop.f32.mrf.mxu0
        %745 = vmatprep.mubr.f32.mxu0 0.0
        %746 = vmatmul.mubr.f32.gmra.mxu0 %v370
        %v747 = vpop.f32.mrf.mxu0
        %v748 = vadd.f32 %v399, %v747
        %v749 = vpop.f32.mrf.mxu0
        %750 = vmatprep.mubr.f32.mxu0 0.0
        %751 = vmatmul.mubr.f32.gmra.mxu0 %v371
        %v752 = vpop.f32.mrf.mxu0
        %v753 = vadd.f32 %v399, %v752
        %v754 = vpop.f32.mrf.mxu0
        %755 = vmatprep.mubr.f32.mxu0 0.0
        %756 = vmatmul.mubr.f32.gmra.mxu0 %v372
        %v757 = vpop.f32.mrf.mxu0
        %v758 = vadd.f32 %v399, %v757
        %v759 = vpop.f32.mrf.mxu0
        %760 = vmatprep.mubr.f32.mxu0 0.0
        %761 = vmatmul.mubr.f32.gmra.mxu0 %v373
        %v762 = vpop.f32.mrf.mxu0
        %v763 = vadd.f32 %v399, %v762
        %v764 = vpop.f32.mrf.mxu0
        %765 = vmatprep.mubr.f32.mxu0 0.0
        %766 = vmatmul.mubr.f32.gmra.mxu0 %v374
        %v767 = vpop.f32.mrf.mxu0
        %v768 = vadd.f32 %v399, %v767
        %v769 = vpop.f32.mrf.mxu0
        %770 = vmatprep.mubr.f32.mxu0 0.0
        %771 = vmatmul.mubr.f32.gmra.mxu0 %v375
        %v772 = vpop.f32.mrf.mxu0
        %v773 = vadd.f32 %v399, %v772
        %v774 = vpop.f32.mrf.mxu0
        %775 = vmatprep.mubr.f32.mxu0 0.0
        %776 = vmatmul.mubr.f32.gmra.mxu0 %v376
        %v777 = vpop.f32.mrf.mxu0
        %v778 = vadd.f32 %v399, %v777
        %v779 = vpop.f32.mrf.mxu0
        %780 = vmatprep.mubr.f32.mxu0 0.0
        %781 = vmatmul.mubr.f32.gmra.mxu0 %v377
        %v782 = vpop.f32.mrf.mxu0
        %v783 = vadd.f32 %v399, %v782
        %v784 = vpop.f32.mrf.mxu0
        %785 = vdwg.mxu0
        %v786 = vld [vmem:[#allocation5] sm:$0xff]
        %v787 = vld [vmem:[#allocation5 + $0x8] sm:$0xff]
        %v788 = vld [vmem:[#allocation5 + $0x10] sm:$0xff]
        %v789 = vld [vmem:[#allocation5 + $0x18] sm:$0xff]
        %v790 = vld [vmem:[#allocation5 + $0x20] sm:$0xff]
        %v791 = vld [vmem:[#allocation5 + $0x28] sm:$0xff]
        %v792 = vld [vmem:[#allocation5 + $0x30] sm:$0xff]
        %v793 = vld [vmem:[#allocation5 + $0x38] sm:$0xff]
        %v794 = vld [vmem:[#allocation5 + $0x40] sm:$0xff]
        %v795 = vld [vmem:[#allocation5 + $0x48] sm:$0xff]
        %v796 = vld [vmem:[#allocation5 + $0x50] sm:$0xff]
        %v797 = vld [vmem:[#allocation5 + $0x58] sm:$0xff]
        %v798 = vld [vmem:[#allocation5 + $0x60] sm:$0xff]
        %v799 = vld [vmem:[#allocation5 + $0x68] sm:$0xff]
        %v800 = vld [vmem:[#allocation5 + $0x70] sm:$0xff]
        %v801 = vld [vmem:[#allocation5 + $0x78] sm:$0xff]
        %v802 = vld [vmem:[%s6] sm:$0x1]
        %v804 = vlaneseq
        %v805 = vshrl.u32 %v804, 7
        %v806 = vsub.s32 0, %v805
        %v807 = vrot.slane %v802, %v806
        %809 = vmatprep.subr.mxu0 0.0
        %810 = vmatpush1.msra.mxu0 %v801
        %811 = vmatprep.subr.mxu0 0.0
        %812 = vmatpush1.msra.mxu0 %v800
        %813 = vmatprep.subr.mxu0 0.0
        %814 = vmatpush1.msra.mxu0 %v799
        %815 = vmatprep.subr.mxu0 0.0
        %816 = vmatpush1.msra.mxu0 %v798
        %817 = vmatprep.subr.mxu0 0.0
        %818 = vmatpush1.msra.mxu0 %v797
        %819 = vmatprep.subr.mxu0 0.0
        %820 = vmatpush1.msra.mxu0 %v796
        %821 = vmatprep.subr.mxu0 0.0
        %822 = vmatpush1.msra.mxu0 %v795
        %823 = vmatprep.subr.mxu0 0.0
        %824 = vmatpush1.msra.mxu0 %v794
        %825 = vmatprep.subr.mxu0 0.0
        %826 = vmatpush1.msra.mxu0 %v793
        %827 = vmatprep.subr.mxu0 0.0
        %828 = vmatpush1.msra.mxu0 %v792
        %829 = vmatprep.subr.mxu0 0.0
        %830 = vmatpush1.msra.mxu0 %v791
        %831 = vmatprep.subr.mxu0 0.0
        %832 = vmatpush1.msra.mxu0 %v790
        %833 = vmatprep.subr.mxu0 0.0
        %834 = vmatpush1.msra.mxu0 %v789
        %835 = vmatprep.subr.mxu0 0.0
        %836 = vmatpush1.msra.mxu0 %v788
        %837 = vmatprep.subr.mxu0 0.0
        %838 = vmatpush1.msra.mxu0 %v787
        %839 = vmatprep.subr.mxu0 0.0
        %840 = vmatpush1.msra.mxu0 %v786
        %841 = vmatprep.subr.mxu0 0.0
        %842 = vmatpush2.msra.mxu0 0.0
        %843 = vmatprep.subr.mxu0 0.0
        %844 = vmatpush2.msra.mxu0 0.0
        %845 = vmatprep.subr.mxu0 0.0
        %846 = vmatpush2.msra.mxu0 0.0
        %847 = vmatprep.subr.mxu0 0.0
        %848 = vmatpush2.msra.mxu0 0.0
        %849 = vmatprep.subr.mxu0 0.0
        %850 = vmatpush2.msra.mxu0 0.0
        %851 = vmatprep.subr.mxu0 0.0
        %852 = vmatpush2.msra.mxu0 0.0
        %853 = vmatprep.subr.mxu0 0.0
        %854 = vmatpush2.msra.mxu0 0.0
        %855 = vmatprep.subr.mxu0 0.0
        %856 = vmatpush2.msra.mxu0 0.0
        %857 = vmatprep.subr.mxu0 0.0
        %858 = vmatpush2.msra.mxu0 0.0
        %859 = vmatprep.subr.mxu0 0.0
        %860 = vmatpush2.msra.mxu0 0.0
        %861 = vmatprep.subr.mxu0 0.0
        %862 = vmatpush2.msra.mxu0 0.0
        %863 = vmatprep.subr.mxu0 0.0
        %864 = vmatpush2.msra.mxu0 0.0
        %865 = vmatprep.subr.mxu0 0.0
        %866 = vmatpush2.msra.mxu0 0.0
        %867 = vmatprep.subr.mxu0 0.0
        %868 = vmatpush2.msra.mxu0 0.0
        %869 = vmatprep.subr.mxu0 0.0
        %870 = vmatpush2.msra.mxu0 0.0
        %871 = vmatprep.subr.mxu0 0.0
        %872 = vmatpush2.msra.mxu0 0.0
        %873 = vmatprep.mubr.f32.mxu0 0.0
        %874 = vmatmul.mubr.f32.gmra.mxu0 %v314
        %v875 = vpop.f32.mrf.mxu0
        %v876 = vadd.f32 %v807, %v875
        %v877 = vpop.f32.mrf.mxu0
        %878 = vmatprep.mubr.f32.mxu0 0.0
        %879 = vmatmul.mubr.f32.gmra.mxu0 %v315
        %v880 = vpop.f32.mrf.mxu0
        %v881 = vadd.f32 %v807, %v880
        %v882 = vpop.f32.mrf.mxu0
        %883 = vmatprep.mubr.f32.mxu0 0.0
        %884 = vmatmul.mubr.f32.gmra.mxu0 %v316
        %v885 = vpop.f32.mrf.mxu0
        %v886 = vadd.f32 %v807, %v885
        %v887 = vpop.f32.mrf.mxu0
        %888 = vmatprep.mubr.f32.mxu0 0.0
        %889 = vmatmul.mubr.f32.gmra.mxu0 %v317
        %v890 = vpop.f32.mrf.mxu0
        %v891 = vadd.f32 %v807, %v890
        %v892 = vpop.f32.mrf.mxu0
        %893 = vmatprep.mubr.f32.mxu0 0.0
        %894 = vmatmul.mubr.f32.gmra.mxu0 %v318
        %v895 = vpop.f32.mrf.mxu0
        %v896 = vadd.f32 %v807, %v895
        %v897 = vpop.f32.mrf.mxu0
        %898 = vmatprep.mubr.f32.mxu0 0.0
        %899 = vmatmul.mubr.f32.gmra.mxu0 %v319
        %v900 = vpop.f32.mrf.mxu0
        %v901 = vadd.f32 %v807, %v900
        %v902 = vpop.f32.mrf.mxu0
        %903 = vmatprep.mubr.f32.mxu0 0.0
        %904 = vmatmul.mubr.f32.gmra.mxu0 %v320
        %v905 = vpop.f32.mrf.mxu0
        %v906 = vadd.f32 %v807, %v905
        %v907 = vpop.f32.mrf.mxu0
        %908 = vmatprep.mubr.f32.mxu0 0.0
        %909 = vmatmul.mubr.f32.gmra.mxu0 %v321
        %v910 = vpop.f32.mrf.mxu0
        %v911 = vadd.f32 %v807, %v910
        %v912 = vpop.f32.mrf.mxu0
        %913 = vmatprep.mubr.f32.mxu0 0.0
        %914 = vmatmul.mubr.f32.gmra.mxu0 %v322
        %v915 = vpop.f32.mrf.mxu0
        %v916 = vadd.f32 %v807, %v915
        %v917 = vpop.f32.mrf.mxu0
        %918 = vmatprep.mubr.f32.mxu0 0.0
        %919 = vmatmul.mubr.f32.gmra.mxu0 %v323
        %v920 = vpop.f32.mrf.mxu0
        %v921 = vadd.f32 %v807, %v920
        %v922 = vpop.f32.mrf.mxu0
        %923 = vmatprep.mubr.f32.mxu0 0.0
        %924 = vmatmul.mubr.f32.gmra.mxu0 %v324
        %v925 = vpop.f32.mrf.mxu0
        %v926 = vadd.f32 %v807, %v925
        %v927 = vpop.f32.mrf.mxu0
        %928 = vmatprep.mubr.f32.mxu0 0.0
        %929 = vmatmul.mubr.f32.gmra.mxu0 %v325
        %v930 = vpop.f32.mrf.mxu0
        %v931 = vadd.f32 %v807, %v930
        %v932 = vpop.f32.mrf.mxu0
        %933 = vmatprep.mubr.f32.mxu0 0.0
        %934 = vmatmul.mubr.f32.gmra.mxu0 %v326
        %v935 = vpop.f32.mrf.mxu0
        %v936 = vadd.f32 %v807, %v935
        %v937 = vpop.f32.mrf.mxu0
        %938 = vmatprep.mubr.f32.mxu0 0.0
        %939 = vmatmul.mubr.f32.gmra.mxu0 %v327
        %v940 = vpop.f32.mrf.mxu0
        %v941 = vadd.f32 %v807, %v940
        %v942 = vpop.f32.mrf.mxu0
        %943 = vmatprep.mubr.f32.mxu0 0.0
        %944 = vmatmul.mubr.f32.gmra.mxu0 %v328
        %v945 = vpop.f32.mrf.mxu0
        %v946 = vadd.f32 %v807, %v945
        %v947 = vpop.f32.mrf.mxu0
        %948 = vmatprep.mubr.f32.mxu0 0.0
        %949 = vmatmul.mubr.f32.gmra.mxu0 %v329
        %v950 = vpop.f32.mrf.mxu0
        %v951 = vadd.f32 %v807, %v950
        %v952 = vpop.f32.mrf.mxu0
        %953 = vmatprep.mubr.f32.mxu0 0.0
        %954 = vmatmul.mubr.f32.gmra.mxu0 %v330
        %v955 = vpop.f32.mrf.mxu0
        %v956 = vadd.f32 %v807, %v955
        %v957 = vpop.f32.mrf.mxu0
        %958 = vmatprep.mubr.f32.mxu0 0.0
        %959 = vmatmul.mubr.f32.gmra.mxu0 %v331
        %v960 = vpop.f32.mrf.mxu0
        %v961 = vadd.f32 %v807, %v960
        %v962 = vpop.f32.mrf.mxu0
        %963 = vmatprep.mubr.f32.mxu0 0.0
        %964 = vmatmul.mubr.f32.gmra.mxu0 %v332
        %v965 = vpop.f32.mrf.mxu0
        %v966 = vadd.f32 %v807, %v965
        %v967 = vpop.f32.mrf.mxu0
        %968 = vmatprep.mubr.f32.mxu0 0.0
        %969 = vmatmul.mubr.f32.gmra.mxu0 %v333
        %v970 = vpop.f32.mrf.mxu0
        %v971 = vadd.f32 %v807, %v970
        %v972 = vpop.f32.mrf.mxu0
        %973 = vmatprep.mubr.f32.mxu0 0.0
        %974 = vmatmul.mubr.f32.gmra.mxu0 %v334
        %v975 = vpop.f32.mrf.mxu0
        %v976 = vadd.f32 %v807, %v975
        %v977 = vpop.f32.mrf.mxu0
        %978 = vmatprep.mubr.f32.mxu0 0.0
        %979 = vmatmul.mubr.f32.gmra.mxu0 %v335
        %v980 = vpop.f32.mrf.mxu0
        %v981 = vadd.f32 %v807, %v980
        %v982 = vpop.f32.mrf.mxu0
        %983 = vmatprep.mubr.f32.mxu0 0.0
        %984 = vmatmul.mubr.f32.gmra.mxu0 %v336
        %v985 = vpop.f32.mrf.mxu0
        %v986 = vadd.f32 %v807, %v985
        %v987 = vpop.f32.mrf.mxu0
        %988 = vmatprep.mubr.f32.mxu0 0.0
        %989 = vmatmul.mubr.f32.gmra.mxu0 %v337
        %v990 = vpop.f32.mrf.mxu0
        %v991 = vadd.f32 %v807, %v990
        %v992 = vpop.f32.mrf.mxu0
        %993 = vmatprep.mubr.f32.mxu0 0.0
        %994 = vmatmul.mubr.f32.gmra.mxu0 %v338
        %v995 = vpop.f32.mrf.mxu0
        %v996 = vadd.f32 %v807, %v995
        %v997 = vpop.f32.mrf.mxu0
        %998 = vmatprep.mubr.f32.mxu0 0.0
        %999 = vmatmul.mubr.f32.gmra.mxu0 %v339
        %v1000 = vpop.f32.mrf.mxu0
        %v1001 = vadd.f32 %v807, %v1000
        %v1002 = vpop.f32.mrf.mxu0
        %1003 = vmatprep.mubr.f32.mxu0 0.0
        %1004 = vmatmul.mubr.f32.gmra.mxu0 %v340
        %v1005 = vpop.f32.mrf.mxu0
        %v1006 = vadd.f32 %v807, %v1005
        %v1007 = vpop.f32.mrf.mxu0
        %1008 = vmatprep.mubr.f32.mxu0 0.0
        %1009 = vmatmul.mubr.f32.gmra.mxu0 %v341
        %v1010 = vpop.f32.mrf.mxu0
        %v1011 = vadd.f32 %v807, %v1010
        %v1012 = vpop.f32.mrf.mxu0
        %1013 = vmatprep.mubr.f32.mxu0 0.0
        %1014 = vmatmul.mubr.f32.gmra.mxu0 %v342
        %v1015 = vpop.f32.mrf.mxu0
        %v1016 = vadd.f32 %v807, %v1015
        %v1017 = vpop.f32.mrf.mxu0
        %1018 = vmatprep.mubr.f32.mxu0 0.0
        %1019 = vmatmul.mubr.f32.gmra.mxu0 %v343
        %v1020 = vpop.f32.mrf.mxu0
        %v1021 = vadd.f32 %v807, %v1020
        %v1022 = vpop.f32.mrf.mxu0
        %1023 = vmatprep.mubr.f32.mxu0 0.0
        %1024 = vmatmul.mubr.f32.gmra.mxu0 %v344
        %v1025 = vpop.f32.mrf.mxu0
        %v1026 = vadd.f32 %v807, %v1025
        %v1027 = vpop.f32.mrf.mxu0
        %1028 = vmatprep.mubr.f32.mxu0 0.0
        %1029 = vmatmul.mubr.f32.gmra.mxu0 %v345
        %v1030 = vpop.f32.mrf.mxu0
        %v1031 = vadd.f32 %v807, %v1030
        %v1032 = vpop.f32.mrf.mxu0
        %1033 = vmatprep.mubr.f32.mxu0 0.0
        %1034 = vmatmul.mubr.f32.gmra.mxu0 %v346
        %v1035 = vpop.f32.mrf.mxu0
        %v1036 = vadd.f32 %v807, %v1035
        %v1037 = vpop.f32.mrf.mxu0
        %1038 = vmatprep.mubr.f32.mxu0 0.0
        %1039 = vmatmul.mubr.f32.gmra.mxu0 %v347
        %v1040 = vpop.f32.mrf.mxu0
        %v1041 = vadd.f32 %v807, %v1040
        %v1042 = vpop.f32.mrf.mxu0
        %1043 = vmatprep.mubr.f32.mxu0 0.0
        %1044 = vmatmul.mubr.f32.gmra.mxu0 %v348
        %v1045 = vpop.f32.mrf.mxu0
        %v1046 = vadd.f32 %v807, %v1045
        %v1047 = vpop.f32.mrf.mxu0
        %1048 = vmatprep.mubr.f32.mxu0 0.0
        %1049 = vmatmul.mubr.f32.gmra.mxu0 %v349
        %v1050 = vpop.f32.mrf.mxu0
        %v1051 = vadd.f32 %v807, %v1050
        %v1052 = vpop.f32.mrf.mxu0
        %1053 = vmatprep.mubr.f32.mxu0 0.0
        %1054 = vmatmul.mubr.f32.gmra.mxu0 %v350
        %v1055 = vpop.f32.mrf.mxu0
        %v1056 = vadd.f32 %v807, %v1055
        %v1057 = vpop.f32.mrf.mxu0
        %1058 = vmatprep.mubr.f32.mxu0 0.0
        %1059 = vmatmul.mubr.f32.gmra.mxu0 %v351
        %v1060 = vpop.f32.mrf.mxu0
        %v1061 = vadd.f32 %v807, %v1060
        %v1062 = vpop.f32.mrf.mxu0
        %1063 = vmatprep.mubr.f32.mxu0 0.0
        %1064 = vmatmul.mubr.f32.gmra.mxu0 %v352
        %v1065 = vpop.f32.mrf.mxu0
        %v1066 = vadd.f32 %v807, %v1065
        %v1067 = vpop.f32.mrf.mxu0
        %1068 = vmatprep.mubr.f32.mxu0 0.0
        %1069 = vmatmul.mubr.f32.gmra.mxu0 %v353
        %v1070 = vpop.f32.mrf.mxu0
        %v1071 = vadd.f32 %v807, %v1070
        %v1072 = vpop.f32.mrf.mxu0
        %1073 = vmatprep.mubr.f32.mxu0 0.0
        %1074 = vmatmul.mubr.f32.gmra.mxu0 %v354
        %v1075 = vpop.f32.mrf.mxu0
        %v1076 = vadd.f32 %v807, %v1075
        %v1077 = vpop.f32.mrf.mxu0
        %1078 = vmatprep.mubr.f32.mxu0 0.0
        %1079 = vmatmul.mubr.f32.gmra.mxu0 %v355
        %v1080 = vpop.f32.mrf.mxu0
        %v1081 = vadd.f32 %v807, %v1080
        %v1082 = vpop.f32.mrf.mxu0
        %1083 = vmatprep.mubr.f32.mxu0 0.0
        %1084 = vmatmul.mubr.f32.gmra.mxu0 %v356
        %v1085 = vpop.f32.mrf.mxu0
        %v1086 = vadd.f32 %v807, %v1085
        %v1087 = vpop.f32.mrf.mxu0
        %1088 = vmatprep.mubr.f32.mxu0 0.0
        %1089 = vmatmul.mubr.f32.gmra.mxu0 %v357
        %v1090 = vpop.f32.mrf.mxu0
        %v1091 = vadd.f32 %v807, %v1090
        %v1092 = vpop.f32.mrf.mxu0
        %1093 = vmatprep.mubr.f32.mxu0 0.0
        %1094 = vmatmul.mubr.f32.gmra.mxu0 %v358
        %v1095 = vpop.f32.mrf.mxu0
        %v1096 = vadd.f32 %v807, %v1095
        %v1097 = vpop.f32.mrf.mxu0
        %1098 = vmatprep.mubr.f32.mxu0 0.0
        %1099 = vmatmul.mubr.f32.gmra.mxu0 %v359
        %v1100 = vpop.f32.mrf.mxu0
        %v1101 = vadd.f32 %v807, %v1100
        %v1102 = vpop.f32.mrf.mxu0
        %1103 = vmatprep.mubr.f32.mxu0 0.0
        %1104 = vmatmul.mubr.f32.gmra.mxu0 %v360
        %v1105 = vpop.f32.mrf.mxu0
        %v1106 = vadd.f32 %v807, %v1105
        %v1107 = vpop.f32.mrf.mxu0
        %1108 = vmatprep.mubr.f32.mxu0 0.0
        %1109 = vmatmul.mubr.f32.gmra.mxu0 %v361
        %v1110 = vpop.f32.mrf.mxu0
        %v1111 = vadd.f32 %v807, %v1110
        %v1112 = vpop.f32.mrf.mxu0
        %1113 = vmatprep.mubr.f32.mxu0 0.0
        %1114 = vmatmul.mubr.f32.gmra.mxu0 %v362
        %v1115 = vpop.f32.mrf.mxu0
        %v1116 = vadd.f32 %v807, %v1115
        %v1117 = vpop.f32.mrf.mxu0
        %1118 = vmatprep.mubr.f32.mxu0 0.0
        %1119 = vmatmul.mubr.f32.gmra.mxu0 %v363
        %v1120 = vpop.f32.mrf.mxu0
        %v1121 = vadd.f32 %v807, %v1120
        %v1122 = vpop.f32.mrf.mxu0
        %1123 = vmatprep.mubr.f32.mxu0 0.0
        %1124 = vmatmul.mubr.f32.gmra.mxu0 %v364
        %v1125 = vpop.f32.mrf.mxu0
        %v1126 = vadd.f32 %v807, %v1125
        %v1127 = vpop.f32.mrf.mxu0
        %1128 = vmatprep.mubr.f32.mxu0 0.0
        %1129 = vmatmul.mubr.f32.gmra.mxu0 %v365
        %v1130 = vpop.f32.mrf.mxu0
        %v1131 = vadd.f32 %v807, %v1130
        %v1132 = vpop.f32.mrf.mxu0
        %1133 = vmatprep.mubr.f32.mxu0 0.0
        %1134 = vmatmul.mubr.f32.gmra.mxu0 %v366
        %v1135 = vpop.f32.mrf.mxu0
        %v1136 = vadd.f32 %v807, %v1135
        %v1137 = vpop.f32.mrf.mxu0
        %1138 = vmatprep.mubr.f32.mxu0 0.0
        %1139 = vmatmul.mubr.f32.gmra.mxu0 %v367
        %v1140 = vpop.f32.mrf.mxu0
        %v1141 = vadd.f32 %v807, %v1140
        %v1142 = vpop.f32.mrf.mxu0
        %1143 = vmatprep.mubr.f32.mxu0 0.0
        %1144 = vmatmul.mubr.f32.gmra.mxu0 %v368
        %v1145 = vpop.f32.mrf.mxu0
        %v1146 = vadd.f32 %v807, %v1145
        %v1147 = vpop.f32.mrf.mxu0
        %1148 = vmatprep.mubr.f32.mxu0 0.0
        %1149 = vmatmul.mubr.f32.gmra.mxu0 %v369
        %v1150 = vpop.f32.mrf.mxu0
        %v1151 = vadd.f32 %v807, %v1150
        %v1152 = vpop.f32.mrf.mxu0
        %1153 = vmatprep.mubr.f32.mxu0 0.0
        %1154 = vmatmul.mubr.f32.gmra.mxu0 %v370
        %v1155 = vpop.f32.mrf.mxu0
        %v1156 = vadd.f32 %v807, %v1155
        %v1157 = vpop.f32.mrf.mxu0
        %1158 = vmatprep.mubr.f32.mxu0 0.0
        %1159 = vmatmul.mubr.f32.gmra.mxu0 %v371
        %v1160 = vpop.f32.mrf.mxu0
        %v1161 = vadd.f32 %v807, %v1160
        %v1162 = vpop.f32.mrf.mxu0
        %1163 = vmatprep.mubr.f32.mxu0 0.0
        %1164 = vmatmul.mubr.f32.gmra.mxu0 %v372
        %v1165 = vpop.f32.mrf.mxu0
        %v1166 = vadd.f32 %v807, %v1165
        %v1167 = vpop.f32.mrf.mxu0
        %1168 = vmatprep.mubr.f32.mxu0 0.0
        %1169 = vmatmul.mubr.f32.gmra.mxu0 %v373
        %v1170 = vpop.f32.mrf.mxu0
        %v1171 = vadd.f32 %v807, %v1170
        %v1172 = vpop.f32.mrf.mxu0
        %1173 = vmatprep.mubr.f32.mxu0 0.0
        %1174 = vmatmul.mubr.f32.gmra.mxu0 %v374
        %v1175 = vpop.f32.mrf.mxu0
        %v1176 = vadd.f32 %v807, %v1175
        %v1177 = vpop.f32.mrf.mxu0
        %1178 = vmatprep.mubr.f32.mxu0 0.0
        %1179 = vmatmul.mubr.f32.gmra.mxu0 %v375
        %v1180 = vpop.f32.mrf.mxu0
        %v1181 = vadd.f32 %v807, %v1180
        %v1182 = vpop.f32.mrf.mxu0
        %1183 = vmatprep.mubr.f32.mxu0 0.0
        %1184 = vmatmul.mubr.f32.gmra.mxu0 %v376
        %v1185 = vpop.f32.mrf.mxu0
        %v1186 = vadd.f32 %v807, %v1185
        %v1187 = vpop.f32.mrf.mxu0
        %1188 = vmatprep.mubr.f32.mxu0 0.0
        %1189 = vmatmul.mubr.f32.gmra.mxu0 %v377
        %v1190 = vpop.f32.mrf.mxu0
        %v1191 = vadd.f32 %v807, %v1190
        %v1192 = vpop.f32.mrf.mxu0
        %1193 = vdwg.mxu0
        %v1194 = vld [vmem:[%s1] sm:$0xff]
        %v1195 = vld [vmem:[%s1 + $0x8] sm:$0xff]
        %v1196 = vld [vmem:[%s1 + $0x10] sm:$0xff]
        %v1197 = vld [vmem:[%s1 + $0x18] sm:$0xff]
        %v1198 = vld [vmem:[%s1 + $0x20] sm:$0xff]
        %v1199 = vld [vmem:[%s1 + $0x28] sm:$0xff]
        %v1200 = vld [vmem:[%s1 + $0x30] sm:$0xff]
        %v1201 = vld [vmem:[%s1 + $0x38] sm:$0xff]
        %v1202 = vld [vmem:[%s1 + $0x40] sm:$0xff]
        %v1203 = vld [vmem:[%s1 + $0x48] sm:$0xff]
        %v1204 = vld [vmem:[%s1 + $0x50] sm:$0xff]
        %v1205 = vld [vmem:[%s1 + $0x58] sm:$0xff]
        %v1206 = vld [vmem:[%s1 + $0x60] sm:$0xff]
        %v1207 = vld [vmem:[%s1 + $0x68] sm:$0xff]
        %v1208 = vld [vmem:[%s1 + $0x70] sm:$0xff]
        %v1209 = vld [vmem:[%s1 + $0x78] sm:$0xff]
        %1210 = vmatprep.subr.mxu0 0.0
        %1211 = vmatpush1.msra.mxu0 %v1209
        %1212 = vmatprep.subr.mxu0 0.0
        %1213 = vmatpush1.msra.mxu0 %v1208
        %1214 = vmatprep.subr.mxu0 0.0
        %1215 = vmatpush1.msra.mxu0 %v1207
        %1216 = vmatprep.subr.mxu0 0.0
        %1217 = vmatpush1.msra.mxu0 %v1206
        %1218 = vmatprep.subr.mxu0 0.0
        %1219 = vmatpush1.msra.mxu0 %v1205
        %1220 = vmatprep.subr.mxu0 0.0
        %1221 = vmatpush1.msra.mxu0 %v1204
        %1222 = vmatprep.subr.mxu0 0.0
        %1223 = vmatpush1.msra.mxu0 %v1203
        %1224 = vmatprep.subr.mxu0 0.0
        %1225 = vmatpush1.msra.mxu0 %v1202
        %1226 = vmatprep.subr.mxu0 0.0
        %1227 = vmatpush1.msra.mxu0 %v1201
        %1228 = vmatprep.subr.mxu0 0.0
        %1229 = vmatpush1.msra.mxu0 %v1200
        %1230 = vmatprep.subr.mxu0 0.0
        %1231 = vmatpush1.msra.mxu0 %v1199
        %1232 = vmatprep.subr.mxu0 0.0
        %1233 = vmatpush1.msra.mxu0 %v1198
        %1234 = vmatprep.subr.mxu0 0.0
        %1235 = vmatpush1.msra.mxu0 %v1197
        %1236 = vmatprep.subr.mxu0 0.0
        %1237 = vmatpush1.msra.mxu0 %v1196
        %1238 = vmatprep.subr.mxu0 0.0
        %1239 = vmatpush1.msra.mxu0 %v1195
        %1240 = vmatprep.subr.mxu0 0.0
        %1241 = vmatpush1.msra.mxu0 %v1194
        %1242 = vmatprep.subr.mxu0 0.0
        %1243 = vmatpush2.msra.mxu0 0.0
        %1244 = vmatprep.subr.mxu0 0.0
        %1245 = vmatpush2.msra.mxu0 0.0
        %1246 = vmatprep.subr.mxu0 0.0
        %1247 = vmatpush2.msra.mxu0 0.0
        %1248 = vmatprep.subr.mxu0 0.0
        %1249 = vmatpush2.msra.mxu0 0.0
        %1250 = vmatprep.subr.mxu0 0.0
        %1251 = vmatpush2.msra.mxu0 0.0
        %1252 = vmatprep.subr.mxu0 0.0
        %1253 = vmatpush2.msra.mxu0 0.0
        %1254 = vmatprep.subr.mxu0 0.0
        %1255 = vmatpush2.msra.mxu0 0.0
        %1256 = vmatprep.subr.mxu0 0.0
        %1257 = vmatpush2.msra.mxu0 0.0
        %1258 = vmatprep.subr.mxu0 0.0
        %1259 = vmatpush2.msra.mxu0 0.0
        %1260 = vmatprep.subr.mxu0 0.0
        %1261 = vmatpush2.msra.mxu0 0.0
        %1262 = vmatprep.subr.mxu0 0.0
        %1263 = vmatpush2.msra.mxu0 0.0
        %1264 = vmatprep.subr.mxu0 0.0
        %1265 = vmatpush2.msra.mxu0 0.0
        %1266 = vmatprep.subr.mxu0 0.0
        %1267 = vmatpush2.msra.mxu0 0.0
        %1268 = vmatprep.subr.mxu0 0.0
        %1269 = vmatpush2.msra.mxu0 0.0
        %1270 = vmatprep.subr.mxu0 0.0
        %1271 = vmatpush2.msra.mxu0 0.0
        %1272 = vmatprep.subr.mxu0 0.0
        %1273 = vmatpush2.msra.mxu0 0.0
        %1274 = vmatprep.mubr.f32.mxu0 0.0
        %1275 = vmatmul.mubr.f32.gmra.mxu0 %v468
        %v1276 = vpop.f32.mrf.mxu0
        %v1277 = vadd.f32 0.0, %v1276
        %v1278 = vpop.f32.mrf.mxu0
        %1279 = vmatprep.mubr.f32.mxu0 0.0
        %1280 = vmatmul.mubr.f32.gmra.mxu0 %v473
        %v1281 = vpop.f32.mrf.mxu0
        %v1282 = vadd.f32 0.0, %v1281
        %v1283 = vpop.f32.mrf.mxu0
        %1284 = vmatprep.mubr.f32.mxu0 0.0
        %1285 = vmatmul.mubr.f32.gmra.mxu0 %v478
        %v1286 = vpop.f32.mrf.mxu0
        %v1287 = vadd.f32 0.0, %v1286
        %v1288 = vpop.f32.mrf.mxu0
        %1289 = vmatprep.mubr.f32.mxu0 0.0
        %1290 = vmatmul.mubr.f32.gmra.mxu0 %v483
        %v1291 = vpop.f32.mrf.mxu0
        %v1292 = vadd.f32 0.0, %v1291
        %v1293 = vpop.f32.mrf.mxu0
        %1294 = vmatprep.mubr.f32.mxu0 0.0
        %1295 = vmatmul.mubr.f32.gmra.mxu0 %v488
        %v1296 = vpop.f32.mrf.mxu0
        %v1297 = vadd.f32 0.0, %v1296
        %v1298 = vpop.f32.mrf.mxu0
        %1299 = vmatprep.mubr.f32.mxu0 0.0
        %1300 = vmatmul.mubr.f32.gmra.mxu0 %v493
        %v1301 = vpop.f32.mrf.mxu0
        %v1302 = vadd.f32 0.0, %v1301
        %v1303 = vpop.f32.mrf.mxu0
        %1304 = vmatprep.mubr.f32.mxu0 0.0
        %1305 = vmatmul.mubr.f32.gmra.mxu0 %v498
        %v1306 = vpop.f32.mrf.mxu0
        %v1307 = vadd.f32 0.0, %v1306
        %v1308 = vpop.f32.mrf.mxu0
        %1309 = vmatprep.mubr.f32.mxu0 0.0
        %1310 = vmatmul.mubr.f32.gmra.mxu0 %v503
        %v1311 = vpop.f32.mrf.mxu0
        %v1312 = vadd.f32 0.0, %v1311
        %v1313 = vpop.f32.mrf.mxu0
        %1314 = vmatprep.mubr.f32.mxu0 0.0
        %1315 = vmatmul.mubr.f32.gmra.mxu0 %v508
        %v1316 = vpop.f32.mrf.mxu0
        %v1317 = vadd.f32 0.0, %v1316
        %v1318 = vpop.f32.mrf.mxu0
        %1319 = vmatprep.mubr.f32.mxu0 0.0
        %1320 = vmatmul.mubr.f32.gmra.mxu0 %v513
        %v1321 = vpop.f32.mrf.mxu0
        %v1322 = vadd.f32 0.0, %v1321
        %v1323 = vpop.f32.mrf.mxu0
        %1324 = vmatprep.mubr.f32.mxu0 0.0
        %1325 = vmatmul.mubr.f32.gmra.mxu0 %v518
        %v1326 = vpop.f32.mrf.mxu0
        %v1327 = vadd.f32 0.0, %v1326
        %v1328 = vpop.f32.mrf.mxu0
        %1329 = vmatprep.mubr.f32.mxu0 0.0
        %1330 = vmatmul.mubr.f32.gmra.mxu0 %v523
        %v1331 = vpop.f32.mrf.mxu0
        %v1332 = vadd.f32 0.0, %v1331
        %v1333 = vpop.f32.mrf.mxu0
        %1334 = vmatprep.mubr.f32.mxu0 0.0
        %1335 = vmatmul.mubr.f32.gmra.mxu0 %v528
        %v1336 = vpop.f32.mrf.mxu0
        %v1337 = vadd.f32 0.0, %v1336
        %v1338 = vpop.f32.mrf.mxu0
        %1339 = vmatprep.mubr.f32.mxu0 0.0
        %1340 = vmatmul.mubr.f32.gmra.mxu0 %v533
        %v1341 = vpop.f32.mrf.mxu0
        %v1342 = vadd.f32 0.0, %v1341
        %v1343 = vpop.f32.mrf.mxu0
        %1344 = vmatprep.mubr.f32.mxu0 0.0
        %1345 = vmatmul.mubr.f32.gmra.mxu0 %v538
        %v1346 = vpop.f32.mrf.mxu0
        %v1347 = vadd.f32 0.0, %v1346
        %v1348 = vpop.f32.mrf.mxu0
        %1349 = vmatprep.mubr.f32.mxu0 0.0
        %1350 = vmatmul.mubr.f32.gmra.mxu0 %v543
        %v1351 = vpop.f32.mrf.mxu0
        %v1352 = vadd.f32 0.0, %v1351
        %v1353 = vpop.f32.mrf.mxu0
        %1354 = vmatprep.mubr.f32.mxu0 0.0
        %1355 = vmatmul.mubr.f32.gmra.mxu0 %v548
        %v1356 = vpop.f32.mrf.mxu0
        %v1357 = vadd.f32 0.0, %v1356
        %v1358 = vpop.f32.mrf.mxu0
        %1359 = vmatprep.mubr.f32.mxu0 0.0
        %1360 = vmatmul.mubr.f32.gmra.mxu0 %v553
        %v1361 = vpop.f32.mrf.mxu0
        %v1362 = vadd.f32 0.0, %v1361
        %v1363 = vpop.f32.mrf.mxu0
        %1364 = vmatprep.mubr.f32.mxu0 0.0
        %1365 = vmatmul.mubr.f32.gmra.mxu0 %v558
        %v1366 = vpop.f32.mrf.mxu0
        %v1367 = vadd.f32 0.0, %v1366
        %v1368 = vpop.f32.mrf.mxu0
        %1369 = vmatprep.mubr.f32.mxu0 0.0
        %1370 = vmatmul.mubr.f32.gmra.mxu0 %v563
        %v1371 = vpop.f32.mrf.mxu0
        %v1372 = vadd.f32 0.0, %v1371
        %v1373 = vpop.f32.mrf.mxu0
        %1374 = vmatprep.mubr.f32.mxu0 0.0
        %1375 = vmatmul.mubr.f32.gmra.mxu0 %v568
        %v1376 = vpop.f32.mrf.mxu0
        %v1377 = vadd.f32 0.0, %v1376
        %v1378 = vpop.f32.mrf.mxu0
        %1379 = vmatprep.mubr.f32.mxu0 0.0
        %1380 = vmatmul.mubr.f32.gmra.mxu0 %v573
        %v1381 = vpop.f32.mrf.mxu0
        %v1382 = vadd.f32 0.0, %v1381
        %v1383 = vpop.f32.mrf.mxu0
        %1384 = vmatprep.mubr.f32.mxu0 0.0
        %1385 = vmatmul.mubr.f32.gmra.mxu0 %v578
        %v1386 = vpop.f32.mrf.mxu0
        %v1387 = vadd.f32 0.0, %v1386
        %v1388 = vpop.f32.mrf.mxu0
        %1389 = vmatprep.mubr.f32.mxu0 0.0
        %1390 = vmatmul.mubr.f32.gmra.mxu0 %v583
        %v1391 = vpop.f32.mrf.mxu0
        %v1392 = vadd.f32 0.0, %v1391
        %v1393 = vpop.f32.mrf.mxu0
        %1394 = vmatprep.mubr.f32.mxu0 0.0
        %1395 = vmatmul.mubr.f32.gmra.mxu0 %v588
        %v1396 = vpop.f32.mrf.mxu0
        %v1397 = vadd.f32 0.0, %v1396
        %v1398 = vpop.f32.mrf.mxu0
        %1399 = vmatprep.mubr.f32.mxu0 0.0
        %1400 = vmatmul.mubr.f32.gmra.mxu0 %v593
        %v1401 = vpop.f32.mrf.mxu0
        %v1402 = vadd.f32 0.0, %v1401
        %v1403 = vpop.f32.mrf.mxu0
        %1404 = vmatprep.mubr.f32.mxu0 0.0
        %1405 = vmatmul.mubr.f32.gmra.mxu0 %v598
        %v1406 = vpop.f32.mrf.mxu0
        %v1407 = vadd.f32 0.0, %v1406
        %v1408 = vpop.f32.mrf.mxu0
        %1409 = vmatprep.mubr.f32.mxu0 0.0
        %1410 = vmatmul.mubr.f32.gmra.mxu0 %v603
        %v1411 = vpop.f32.mrf.mxu0
        %v1412 = vadd.f32 0.0, %v1411
        %v1413 = vpop.f32.mrf.mxu0
        %1414 = vmatprep.mubr.f32.mxu0 0.0
        %1415 = vmatmul.mubr.f32.gmra.mxu0 %v608
        %v1416 = vpop.f32.mrf.mxu0
        %v1417 = vadd.f32 0.0, %v1416
        %v1418 = vpop.f32.mrf.mxu0
        %1419 = vmatprep.mubr.f32.mxu0 0.0
        %1420 = vmatmul.mubr.f32.gmra.mxu0 %v613
        %v1421 = vpop.f32.mrf.mxu0
        %v1422 = vadd.f32 0.0, %v1421
        %v1423 = vpop.f32.mrf.mxu0
        %1424 = vmatprep.mubr.f32.mxu0 0.0
        %1425 = vmatmul.mubr.f32.gmra.mxu0 %v618
        %v1426 = vpop.f32.mrf.mxu0
        %v1427 = vadd.f32 0.0, %v1426
        %v1428 = vpop.f32.mrf.mxu0
        %1429 = vmatprep.mubr.f32.mxu0 0.0
        %1430 = vmatmul.mubr.f32.gmra.mxu0 %v623
        %v1431 = vpop.f32.mrf.mxu0
        %v1432 = vadd.f32 0.0, %v1431
        %v1433 = vpop.f32.mrf.mxu0
        %1434 = vmatprep.mubr.f32.mxu0 0.0
        %1435 = vmatmul.mubr.f32.gmra.mxu0 %v628
        %v1436 = vpop.f32.mrf.mxu0
        %v1437 = vadd.f32 0.0, %v1436
        %v1438 = vpop.f32.mrf.mxu0
        %1439 = vmatprep.mubr.f32.mxu0 0.0
        %1440 = vmatmul.mubr.f32.gmra.mxu0 %v633
        %v1441 = vpop.f32.mrf.mxu0
        %v1442 = vadd.f32 0.0, %v1441
        %v1443 = vpop.f32.mrf.mxu0
        %1444 = vmatprep.mubr.f32.mxu0 0.0
        %1445 = vmatmul.mubr.f32.gmra.mxu0 %v638
        %v1446 = vpop.f32.mrf.mxu0
        %v1447 = vadd.f32 0.0, %v1446
        %v1448 = vpop.f32.mrf.mxu0
        %1449 = vmatprep.mubr.f32.mxu0 0.0
        %1450 = vmatmul.mubr.f32.gmra.mxu0 %v643
        %v1451 = vpop.f32.mrf.mxu0
        %v1452 = vadd.f32 0.0, %v1451
        %v1453 = vpop.f32.mrf.mxu0
        %1454 = vmatprep.mubr.f32.mxu0 0.0
        %1455 = vmatmul.mubr.f32.gmra.mxu0 %v648
        %v1456 = vpop.f32.mrf.mxu0
        %v1457 = vadd.f32 0.0, %v1456
        %v1458 = vpop.f32.mrf.mxu0
        %1459 = vmatprep.mubr.f32.mxu0 0.0
        %1460 = vmatmul.mubr.f32.gmra.mxu0 %v653
        %v1461 = vpop.f32.mrf.mxu0
        %v1462 = vadd.f32 0.0, %v1461
        %v1463 = vpop.f32.mrf.mxu0
        %1464 = vmatprep.mubr.f32.mxu0 0.0
        %1465 = vmatmul.mubr.f32.gmra.mxu0 %v658
        %v1466 = vpop.f32.mrf.mxu0
        %v1467 = vadd.f32 0.0, %v1466
        %v1468 = vpop.f32.mrf.mxu0
        %1469 = vmatprep.mubr.f32.mxu0 0.0
        %1470 = vmatmul.mubr.f32.gmra.mxu0 %v663
        %v1471 = vpop.f32.mrf.mxu0
        %v1472 = vadd.f32 0.0, %v1471
        %v1473 = vpop.f32.mrf.mxu0
        %1474 = vmatprep.mubr.f32.mxu0 0.0
        %1475 = vmatmul.mubr.f32.gmra.mxu0 %v668
        %v1476 = vpop.f32.mrf.mxu0
        %v1477 = vadd.f32 0.0, %v1476
        %v1478 = vpop.f32.mrf.mxu0
        %1479 = vmatprep.mubr.f32.mxu0 0.0
        %1480 = vmatmul.mubr.f32.gmra.mxu0 %v673
        %v1481 = vpop.f32.mrf.mxu0
        %v1482 = vadd.f32 0.0, %v1481
        %v1483 = vpop.f32.mrf.mxu0
        %1484 = vmatprep.mubr.f32.mxu0 0.0
        %1485 = vmatmul.mubr.f32.gmra.mxu0 %v678
        %v1486 = vpop.f32.mrf.mxu0
        %v1487 = vadd.f32 0.0, %v1486
        %v1488 = vpop.f32.mrf.mxu0
        %1489 = vmatprep.mubr.f32.mxu0 0.0
        %1490 = vmatmul.mubr.f32.gmra.mxu0 %v683
        %v1491 = vpop.f32.mrf.mxu0
        %v1492 = vadd.f32 0.0, %v1491
        %v1493 = vpop.f32.mrf.mxu0
        %1494 = vmatprep.mubr.f32.mxu0 0.0
        %1495 = vmatmul.mubr.f32.gmra.mxu0 %v688
        %v1496 = vpop.f32.mrf.mxu0
        %v1497 = vadd.f32 0.0, %v1496
        %v1498 = vpop.f32.mrf.mxu0
        %1499 = vmatprep.mubr.f32.mxu0 0.0
        %1500 = vmatmul.mubr.f32.gmra.mxu0 %v693
        %v1501 = vpop.f32.mrf.mxu0
        %v1502 = vadd.f32 0.0, %v1501
        %v1503 = vpop.f32.mrf.mxu0
        %1504 = vmatprep.mubr.f32.mxu0 0.0
        %1505 = vmatmul.mubr.f32.gmra.mxu0 %v698
        %v1506 = vpop.f32.mrf.mxu0
        %v1507 = vadd.f32 0.0, %v1506
        %v1508 = vpop.f32.mrf.mxu0
        %1509 = vmatprep.mubr.f32.mxu0 0.0
        %1510 = vmatmul.mubr.f32.gmra.mxu0 %v703
        %v1511 = vpop.f32.mrf.mxu0
        %v1512 = vadd.f32 0.0, %v1511
        %v1513 = vpop.f32.mrf.mxu0
        %1514 = vmatprep.mubr.f32.mxu0 0.0
        %1515 = vmatmul.mubr.f32.gmra.mxu0 %v708
        %v1516 = vpop.f32.mrf.mxu0
        %v1517 = vadd.f32 0.0, %v1516
        %v1518 = vpop.f32.mrf.mxu0
        %1519 = vmatprep.mubr.f32.mxu0 0.0
        %1520 = vmatmul.mubr.f32.gmra.mxu0 %v713
        %v1521 = vpop.f32.mrf.mxu0
        %v1522 = vadd.f32 0.0, %v1521
        %v1523 = vpop.f32.mrf.mxu0
        %1524 = vmatprep.mubr.f32.mxu0 0.0
        %1525 = vmatmul.mubr.f32.gmra.mxu0 %v718
        %v1526 = vpop.f32.mrf.mxu0
        %v1527 = vadd.f32 0.0, %v1526
        %v1528 = vpop.f32.mrf.mxu0
        %1529 = vmatprep.mubr.f32.mxu0 0.0
        %1530 = vmatmul.mubr.f32.gmra.mxu0 %v723
        %v1531 = vpop.f32.mrf.mxu0
        %v1532 = vadd.f32 0.0, %v1531
        %v1533 = vpop.f32.mrf.mxu0
        %1534 = vmatprep.mubr.f32.mxu0 0.0
        %1535 = vmatmul.mubr.f32.gmra.mxu0 %v728
        %v1536 = vpop.f32.mrf.mxu0
        %v1537 = vadd.f32 0.0, %v1536
        %v1538 = vpop.f32.mrf.mxu0
        %1539 = vmatprep.mubr.f32.mxu0 0.0
        %1540 = vmatmul.mubr.f32.gmra.mxu0 %v733
        %v1541 = vpop.f32.mrf.mxu0
        %v1542 = vadd.f32 0.0, %v1541
        %v1543 = vpop.f32.mrf.mxu0
        %1544 = vmatprep.mubr.f32.mxu0 0.0
        %1545 = vmatmul.mubr.f32.gmra.mxu0 %v738
        %v1546 = vpop.f32.mrf.mxu0
        %v1547 = vadd.f32 0.0, %v1546
        %v1548 = vpop.f32.mrf.mxu0
        %1549 = vmatprep.mubr.f32.mxu0 0.0
        %1550 = vmatmul.mubr.f32.gmra.mxu0 %v743
        %v1551 = vpop.f32.mrf.mxu0
        %v1552 = vadd.f32 0.0, %v1551
        %v1553 = vpop.f32.mrf.mxu0
        %1554 = vmatprep.mubr.f32.mxu0 0.0
        %1555 = vmatmul.mubr.f32.gmra.mxu0 %v748
        %v1556 = vpop.f32.mrf.mxu0
        %v1557 = vadd.f32 0.0, %v1556
        %v1558 = vpop.f32.mrf.mxu0
        %1559 = vmatprep.mubr.f32.mxu0 0.0
        %1560 = vmatmul.mubr.f32.gmra.mxu0 %v753
        %v1561 = vpop.f32.mrf.mxu0
        %v1562 = vadd.f32 0.0, %v1561
        %v1563 = vpop.f32.mrf.mxu0
        %1564 = vmatprep.mubr.f32.mxu0 0.0
        %1565 = vmatmul.mubr.f32.gmra.mxu0 %v758
        %v1566 = vpop.f32.mrf.mxu0
        %v1567 = vadd.f32 0.0, %v1566
        %v1568 = vpop.f32.mrf.mxu0
        %1569 = vmatprep.mubr.f32.mxu0 0.0
        %1570 = vmatmul.mubr.f32.gmra.mxu0 %v763
        %v1571 = vpop.f32.mrf.mxu0
        %v1572 = vadd.f32 0.0, %v1571
        %v1573 = vpop.f32.mrf.mxu0
        %1574 = vmatprep.mubr.f32.mxu0 0.0
        %1575 = vmatmul.mubr.f32.gmra.mxu0 %v768
        %v1576 = vpop.f32.mrf.mxu0
        %v1577 = vadd.f32 0.0, %v1576
        %v1578 = vpop.f32.mrf.mxu0
        %1579 = vmatprep.mubr.f32.mxu0 0.0
        %1580 = vmatmul.mubr.f32.gmra.mxu0 %v773
        %v1581 = vpop.f32.mrf.mxu0
        %v1582 = vadd.f32 0.0, %v1581
        %v1583 = vpop.f32.mrf.mxu0
        %1584 = vmatprep.mubr.f32.mxu0 0.0
        %1585 = vmatmul.mubr.f32.gmra.mxu0 %v778
        %v1586 = vpop.f32.mrf.mxu0
        %v1587 = vadd.f32 0.0, %v1586
        %v1588 = vpop.f32.mrf.mxu0
        %1589 = vmatprep.mubr.f32.mxu0 0.0
        %1590 = vmatmul.mubr.f32.gmra.mxu0 %v783
        %v1591 = vpop.f32.mrf.mxu0
        %v1592 = vadd.f32 0.0, %v1591
        %v1593 = vpop.f32.mrf.mxu0
        %1594 = vdwg.mxu0
        %vm1595 = vcmask 64512
        %v1596 = vsel %vm1595, %v1277, -inf
        %v1597 = vsel %vm1595, %v1282, -inf
        %v1598 = vmax.f32 %v1596, %v1597
        %v1599 = vsel %vm1595, %v1287, -inf
        %v1600 = vmax.f32 %v1598, %v1599
        %v1601 = vsel %vm1595, %v1292, -inf
        %v1602 = vmax.f32 %v1600, %v1601
        %v1603 = vsel %vm1595, %v1297, -inf
        %v1604 = vmax.f32 %v1602, %v1603
        %v1605 = vsel %vm1595, %v1302, -inf
        %v1606 = vmax.f32 %v1604, %v1605
        %v1607 = vsel %vm1595, %v1307, -inf
        %v1608 = vmax.f32 %v1606, %v1607
        %v1609 = vsel %vm1595, %v1312, -inf
        %v1610 = vmax.f32 %v1608, %v1609
        %v1611 = vrot.slane %v1610, 4
        %v1612 = vmax.f32 %v1610, %v1611
        %v1613 = vrot.slane %v1612, 2
        %v1614 = vmax.f32 %v1612, %v1613
        %v1615 = vrot.slane %v1614, 1
        %v1616 = vmax.f32 %v1614, %v1615
        %v1617 = vsel %vm1595, %v1317, -inf
        %v1618 = vsel %vm1595, %v1322, -inf
        %v1619 = vmax.f32 %v1617, %v1618
        %v1620 = vsel %vm1595, %v1327, -inf
        %v1621 = vmax.f32 %v1619, %v1620
        %v1622 = vsel %vm1595, %v1332, -inf
        %v1623 = vmax.f32 %v1621, %v1622
        %v1624 = vsel %vm1595, %v1337, -inf
        %v1625 = vmax.f32 %v1623, %v1624
        %v1626 = vsel %vm1595, %v1342, -inf
        %v1627 = vmax.f32 %v1625, %v1626
        %v1628 = vsel %vm1595, %v1347, -inf
        %v1629 = vmax.f32 %v1627, %v1628
        %v1630 = vsel %vm1595, %v1352, -inf
        %v1631 = vmax.f32 %v1629, %v1630
        %v1632 = vrot.slane %v1631, 4
        %v1633 = vmax.f32 %v1631, %v1632
        %v1634 = vrot.slane %v1633, 2
        %v1635 = vmax.f32 %v1633, %v1634
        %v1636 = vrot.slane %v1635, 1
        %v1637 = vmax.f32 %v1635, %v1636
        %v1638 = vsel %vm1595, %v1357, -inf
        %v1639 = vsel %vm1595, %v1362, -inf
        %v1640 = vmax.f32 %v1638, %v1639
        %v1641 = vsel %vm1595, %v1367, -inf
        %v1642 = vmax.f32 %v1640, %v1641
        %v1643 = vsel %vm1595, %v1372, -inf
        %v1644 = vmax.f32 %v1642, %v1643
        %v1645 = vsel %vm1595, %v1377, -inf
        %v1646 = vmax.f32 %v1644, %v1645
        %v1647 = vsel %vm1595, %v1382, -inf
        %v1648 = vmax.f32 %v1646, %v1647
        %v1649 = vsel %vm1595, %v1387, -inf
        %v1650 = vmax.f32 %v1648, %v1649
        %v1651 = vsel %vm1595, %v1392, -inf
        %v1652 = vmax.f32 %v1650, %v1651
        %v1653 = vrot.slane %v1652, 4
        %v1654 = vmax.f32 %v1652, %v1653
        %v1655 = vrot.slane %v1654, 2
        %v1656 = vmax.f32 %v1654, %v1655
        %v1657 = vrot.slane %v1656, 1
        %v1658 = vmax.f32 %v1656, %v1657
        %v1659 = vsel %vm1595, %v1397, -inf
        %v1660 = vsel %vm1595, %v1402, -inf
        %v1661 = vmax.f32 %v1659, %v1660
        %v1662 = vsel %vm1595, %v1407, -inf
        %v1663 = vmax.f32 %v1661, %v1662
        %v1664 = vsel %vm1595, %v1412, -inf
        %v1665 = vmax.f32 %v1663, %v1664
        %v1666 = vsel %vm1595, %v1417, -inf
        %v1667 = vmax.f32 %v1665, %v1666
        %v1668 = vsel %vm1595, %v1422, -inf
        %v1669 = vmax.f32 %v1667, %v1668
        %v1670 = vsel %vm1595, %v1427, -inf
        %v1671 = vmax.f32 %v1669, %v1670
        %v1672 = vsel %vm1595, %v1432, -inf
        %v1673 = vmax.f32 %v1671, %v1672
        %v1674 = vrot.slane %v1673, 4
        %v1675 = vmax.f32 %v1673, %v1674
        %v1676 = vrot.slane %v1675, 2
        %v1677 = vmax.f32 %v1675, %v1676
        %v1678 = vrot.slane %v1677, 1
        %v1679 = vmax.f32 %v1677, %v1678
        %v1680 = vsel %vm1595, %v1437, -inf
        %v1681 = vsel %vm1595, %v1442, -inf
        %v1682 = vmax.f32 %v1680, %v1681
        %v1683 = vsel %vm1595, %v1447, -inf
        %v1684 = vmax.f32 %v1682, %v1683
        %v1685 = vsel %vm1595, %v1452, -inf
        %v1686 = vmax.f32 %v1684, %v1685
        %v1687 = vsel %vm1595, %v1457, -inf
        %v1688 = vmax.f32 %v1686, %v1687
        %v1689 = vsel %vm1595, %v1462, -inf
        %v1690 = vmax.f32 %v1688, %v1689
        %v1691 = vsel %vm1595, %v1467, -inf
        %v1692 = vmax.f32 %v1690, %v1691
        %v1693 = vsel %vm1595, %v1472, -inf
        %v1694 = vmax.f32 %v1692, %v1693
        %v1695 = vrot.slane %v1694, 4
        %v1696 = vmax.f32 %v1694, %v1695
        %v1697 = vrot.slane %v1696, 2
        %v1698 = vmax.f32 %v1696, %v1697
        %v1699 = vrot.slane %v1698, 1
        %v1700 = vmax.f32 %v1698, %v1699
        %v1701 = vsel %vm1595, %v1477, -inf
        %v1702 = vsel %vm1595, %v1482, -inf
        %v1703 = vmax.f32 %v1701, %v1702
        %v1704 = vsel %vm1595, %v1487, -inf
        %v1705 = vmax.f32 %v1703, %v1704
        %v1706 = vsel %vm1595, %v1492, -inf
        %v1707 = vmax.f32 %v1705, %v1706
        %v1708 = vsel %vm1595, %v1497, -inf
        %v1709 = vmax.f32 %v1707, %v1708
        %v1710 = vsel %vm1595, %v1502, -inf
        %v1711 = vmax.f32 %v1709, %v1710
        %v1712 = vsel %vm1595, %v1507, -inf
        %v1713 = vmax.f32 %v1711, %v1712
        %v1714 = vsel %vm1595, %v1512, -inf
        %v1715 = vmax.f32 %v1713, %v1714
        %v1716 = vrot.slane %v1715, 4
        %v1717 = vmax.f32 %v1715, %v1716
        %v1718 = vrot.slane %v1717, 2
        %v1719 = vmax.f32 %v1717, %v1718
        %v1720 = vrot.slane %v1719, 1
        %v1721 = vmax.f32 %v1719, %v1720
        %v1722 = vsel %vm1595, %v1517, -inf
        %v1723 = vsel %vm1595, %v1522, -inf
        %v1724 = vmax.f32 %v1722, %v1723
        %v1725 = vsel %vm1595, %v1527, -inf
        %v1726 = vmax.f32 %v1724, %v1725
        %v1727 = vsel %vm1595, %v1532, -inf
        %v1728 = vmax.f32 %v1726, %v1727
        %v1729 = vsel %vm1595, %v1537, -inf
        %v1730 = vmax.f32 %v1728, %v1729
        %v1731 = vsel %vm1595, %v1542, -inf
        %v1732 = vmax.f32 %v1730, %v1731
        %v1733 = vsel %vm1595, %v1547, -inf
        %v1734 = vmax.f32 %v1732, %v1733
        %v1735 = vsel %vm1595, %v1552, -inf
        %v1736 = vmax.f32 %v1734, %v1735
        %v1737 = vrot.slane %v1736, 4
        %v1738 = vmax.f32 %v1736, %v1737
        %v1739 = vrot.slane %v1738, 2
        %v1740 = vmax.f32 %v1738, %v1739
        %v1741 = vrot.slane %v1740, 1
        %v1742 = vmax.f32 %v1740, %v1741
        %v1743 = vsel %vm1595, %v1557, -inf
        %v1744 = vsel %vm1595, %v1562, -inf
        %v1745 = vmax.f32 %v1743, %v1744
        %v1746 = vsel %vm1595, %v1567, -inf
        %v1747 = vmax.f32 %v1745, %v1746
        %v1748 = vsel %vm1595, %v1572, -inf
        %v1749 = vmax.f32 %v1747, %v1748
        %v1750 = vsel %vm1595, %v1577, -inf
        %v1751 = vmax.f32 %v1749, %v1750
        %v1752 = vsel %vm1595, %v1582, -inf
        %v1753 = vmax.f32 %v1751, %v1752
        %v1754 = vsel %vm1595, %v1587, -inf
        %v1755 = vmax.f32 %v1753, %v1754
        %v1756 = vsel %vm1595, %v1592, -inf
        %v1757 = vmax.f32 %v1755, %v1756
        %v1758 = vrot.slane %v1757, 4
        %v1759 = vmax.f32 %v1757, %v1758
        %v1760 = vrot.slane %v1759, 2
        %v1761 = vmax.f32 %v1759, %v1760
        %v1762 = vrot.slane %v1761, 1
        %v1763 = vmax.f32 %v1761, %v1762
        %v1764 = vsub.f32 %v1277, %v1616
        %v1765 = vsub.f32 %v1282, %v1616
        %v1766 = vsub.f32 %v1287, %v1616
        %v1767 = vsub.f32 %v1292, %v1616
        %v1768 = vsub.f32 %v1297, %v1616
        %v1769 = vsub.f32 %v1302, %v1616
        %v1770 = vsub.f32 %v1307, %v1616
        %v1771 = vsub.f32 %v1312, %v1616
        %v1772 = vsub.f32 %v1317, %v1637
        %v1773 = vsub.f32 %v1322, %v1637
        %v1774 = vsub.f32 %v1327, %v1637
        %v1775 = vsub.f32 %v1332, %v1637
        %v1776 = vsub.f32 %v1337, %v1637
        %v1777 = vsub.f32 %v1342, %v1637
        %v1778 = vsub.f32 %v1347, %v1637
        %v1779 = vsub.f32 %v1352, %v1637
        %v1780 = vsub.f32 %v1357, %v1658
        %v1781 = vsub.f32 %v1362, %v1658
        %v1782 = vsub.f32 %v1367, %v1658
        %v1783 = vsub.f32 %v1372, %v1658
        %v1784 = vsub.f32 %v1377, %v1658
        %v1785 = vsub.f32 %v1382, %v1658
        %v1786 = vsub.f32 %v1387, %v1658
        %v1787 = vsub.f32 %v1392, %v1658
        %v1788 = vsub.f32 %v1397, %v1679
        %v1789 = vsub.f32 %v1402, %v1679
        %v1790 = vsub.f32 %v1407, %v1679
        %v1791 = vsub.f32 %v1412, %v1679
        %v1792 = vsub.f32 %v1417, %v1679
        %v1793 = vsub.f32 %v1422, %v1679
        %v1794 = vsub.f32 %v1427, %v1679
        %v1795 = vsub.f32 %v1432, %v1679
        %v1796 = vsub.f32 %v1437, %v1700
        %v1797 = vsub.f32 %v1442, %v1700
        %v1798 = vsub.f32 %v1447, %v1700
        %v1799 = vsub.f32 %v1452, %v1700
        %v1800 = vsub.f32 %v1457, %v1700
        %v1801 = vsub.f32 %v1462, %v1700
        %v1802 = vsub.f32 %v1467, %v1700
        %v1803 = vsub.f32 %v1472, %v1700
        %v1804 = vsub.f32 %v1477, %v1721
        %v1805 = vsub.f32 %v1482, %v1721
        %v1806 = vsub.f32 %v1487, %v1721
        %v1807 = vsub.f32 %v1492, %v1721
        %v1808 = vsub.f32 %v1497, %v1721
        %v1809 = vsub.f32 %v1502, %v1721
        %v1810 = vsub.f32 %v1507, %v1721
        %v1811 = vsub.f32 %v1512, %v1721
        %v1812 = vsub.f32 %v1517, %v1742
        %v1813 = vsub.f32 %v1522, %v1742
        %v1814 = vsub.f32 %v1527, %v1742
        %v1815 = vsub.f32 %v1532, %v1742
        %v1816 = vsub.f32 %v1537, %v1742
        %v1817 = vsub.f32 %v1542, %v1742
        %v1818 = vsub.f32 %v1547, %v1742
        %v1819 = vsub.f32 %v1552, %v1742
        %v1820 = vsub.f32 %v1557, %v1763
        %v1821 = vsub.f32 %v1562, %v1763
        %v1822 = vsub.f32 %v1567, %v1763
        %v1823 = vsub.f32 %v1572, %v1763
        %v1824 = vsub.f32 %v1577, %v1763
        %v1825 = vsub.f32 %v1582, %v1763
        %v1826 = vsub.f32 %v1587, %v1763
        %v1827 = vsub.f32 %v1592, %v1763
        %v1828 = vmul.f32 %v1764, 1.442695
        %v1829 = vpow.pop %v1828
        %v1830 = vmul.f32 %v1765, 1.442695
        %v1831 = vpow.pop %v1830
        %v1832 = vmul.f32 %v1766, 1.442695
        %v1833 = vpow.pop %v1832
        %v1834 = vmul.f32 %v1767, 1.442695
        %v1835 = vpow.pop %v1834
        %v1836 = vmul.f32 %v1768, 1.442695
        %v1837 = vpow.pop %v1836
        %v1838 = vmul.f32 %v1769, 1.442695
        %v1839 = vpow.pop %v1838
        %v1840 = vmul.f32 %v1770, 1.442695
        %v1841 = vpow.pop %v1840
        %v1842 = vmul.f32 %v1771, 1.442695
        %v1843 = vpow.pop %v1842
        %v1844 = vmul.f32 %v1772, 1.442695
        %v1845 = vpow.pop %v1844
        %v1846 = vmul.f32 %v1773, 1.442695
        %v1847 = vpow.pop %v1846
        %v1848 = vmul.f32 %v1774, 1.442695
        %v1849 = vpow.pop %v1848
        %v1850 = vmul.f32 %v1775, 1.442695
        %v1851 = vpow.pop %v1850
        %v1852 = vmul.f32 %v1776, 1.442695
        %v1853 = vpow.pop %v1852
        %v1854 = vmul.f32 %v1777, 1.442695
        %v1855 = vpow.pop %v1854
        %v1856 = vmul.f32 %v1778, 1.442695
        %v1857 = vpow.pop %v1856
        %v1858 = vmul.f32 %v1779, 1.442695
        %v1859 = vpow.pop %v1858
        %v1860 = vmul.f32 %v1780, 1.442695
        %v1861 = vpow.pop %v1860
        %v1862 = vmul.f32 %v1781, 1.442695
        %v1863 = vpow.pop %v1862
        %v1864 = vmul.f32 %v1782, 1.442695
        %v1865 = vpow.pop %v1864
        %v1866 = vmul.f32 %v1783, 1.442695
        %v1867 = vpow.pop %v1866
        %v1868 = vmul.f32 %v1784, 1.442695
        %v1869 = vpow.pop %v1868
        %v1870 = vmul.f32 %v1785, 1.442695
        %v1871 = vpow.pop %v1870
        %v1872 = vmul.f32 %v1786, 1.442695
        %v1873 = vpow.pop %v1872
        %v1874 = vmul.f32 %v1787, 1.442695
        %v1875 = vpow.pop %v1874
        %v1876 = vmul.f32 %v1788, 1.442695
        %v1877 = vpow.pop %v1876
        %v1878 = vmul.f32 %v1789, 1.442695
        %v1879 = vpow.pop %v1878
        %v1880 = vmul.f32 %v1790, 1.442695
        %v1881 = vpow.pop %v1880
        %v1882 = vmul.f32 %v1791, 1.442695
        %v1883 = vpow.pop %v1882
        %v1884 = vmul.f32 %v1792, 1.442695
        %v1885 = vpow.pop %v1884
        %v1886 = vmul.f32 %v1793, 1.442695
        %v1887 = vpow.pop %v1886
        %v1888 = vmul.f32 %v1794, 1.442695
        %v1889 = vpow.pop %v1888
        %v1890 = vmul.f32 %v1795, 1.442695
        %v1891 = vpow.pop %v1890
        %v1892 = vmul.f32 %v1796, 1.442695
        %v1893 = vpow.pop %v1892
        %v1894 = vmul.f32 %v1797, 1.442695
        %v1895 = vpow.pop %v1894
        %v1896 = vmul.f32 %v1798, 1.442695
        %v1897 = vpow.pop %v1896
        %v1898 = vmul.f32 %v1799, 1.442695
        %v1899 = vpow.pop %v1898
        %v1900 = vmul.f32 %v1800, 1.442695
        %v1901 = vpow.pop %v1900
        %v1902 = vmul.f32 %v1801, 1.442695
        %v1903 = vpow.pop %v1902
        %v1904 = vmul.f32 %v1802, 1.442695
        %v1905 = vpow.pop %v1904
        %v1906 = vmul.f32 %v1803, 1.442695
        %v1907 = vpow.pop %v1906
        %v1908 = vmul.f32 %v1804, 1.442695
        %v1909 = vpow.pop %v1908
        %v1910 = vmul.f32 %v1805, 1.442695
        %v1911 = vpow.pop %v1910
        %v1912 = vmul.f32 %v1806, 1.442695
        %v1913 = vpow.pop %v1912
        %v1914 = vmul.f32 %v1807, 1.442695
        %v1915 = vpow.pop %v1914
        %v1916 = vmul.f32 %v1808, 1.442695
        %v1917 = vpow.pop %v1916
        %v1918 = vmul.f32 %v1809, 1.442695
        %v1919 = vpow.pop %v1918
        %v1920 = vmul.f32 %v1810, 1.442695
        %v1921 = vpow.pop %v1920
        %v1922 = vmul.f32 %v1811, 1.442695
        %v1923 = vpow.pop %v1922
        %v1924 = vmul.f32 %v1812, 1.442695
        %v1925 = vpow.pop %v1924
        %v1926 = vmul.f32 %v1813, 1.442695
        %v1927 = vpow.pop %v1926
        %v1928 = vmul.f32 %v1814, 1.442695
        %v1929 = vpow.pop %v1928
        %v1930 = vmul.f32 %v1815, 1.442695
        %v1931 = vpow.pop %v1930
        %v1932 = vmul.f32 %v1816, 1.442695
        %v1933 = vpow.pop %v1932
        %v1934 = vmul.f32 %v1817, 1.442695
        %v1935 = vpow.pop %v1934
        %v1936 = vmul.f32 %v1818, 1.442695
        %v1937 = vpow.pop %v1936
        %v1938 = vmul.f32 %v1819, 1.442695
        %v1939 = vpow.pop %v1938
        %v1940 = vmul.f32 %v1820, 1.442695
        %v1941 = vpow.pop %v1940
        %v1942 = vmul.f32 %v1821, 1.442695
        %v1943 = vpow.pop %v1942
        %v1944 = vmul.f32 %v1822, 1.442695
        %v1945 = vpow.pop %v1944
        %v1946 = vmul.f32 %v1823, 1.442695
        %v1947 = vpow.pop %v1946
        %v1948 = vmul.f32 %v1824, 1.442695
        %v1949 = vpow.pop %v1948
        %v1950 = vmul.f32 %v1825, 1.442695
        %v1951 = vpow.pop %v1950
        %v1952 = vmul.f32 %v1826, 1.442695
        %v1953 = vpow.pop %v1952
        %v1954 = vmul.f32 %v1827, 1.442695
        %v1955 = vpow.pop %v1954
        %v1956 = vsel %vm1595, %v1829, 0.0
        %v1957 = vsel %vm1595, %v1831, 0.0
        %v1958 = vadd.f32 %v1956, %v1957
        %v1959 = vsel %vm1595, %v1833, 0.0
        %v1960 = vadd.f32 %v1958, %v1959
        %v1961 = vsel %vm1595, %v1835, 0.0
        %v1962 = vadd.f32 %v1960, %v1961
        %v1963 = vsel %vm1595, %v1837, 0.0
        %v1964 = vadd.f32 %v1962, %v1963
        %v1965 = vsel %vm1595, %v1839, 0.0
        %v1966 = vadd.f32 %v1964, %v1965
        %v1967 = vsel %vm1595, %v1841, 0.0
        %v1968 = vadd.f32 %v1966, %v1967
        %v1969 = vsel %vm1595, %v1843, 0.0
        %v1970 = vadd.f32 %v1968, %v1969
        %v1971 = vrot.slane %v1970, 4
        %v1972 = vadd.f32 %v1970, %v1971
        %v1973 = vrot.slane %v1972, 2
        %v1974 = vadd.f32 %v1972, %v1973
        %v1975 = vrot.slane %v1974, 1
        %v1976 = vadd.f32 %v1974, %v1975
        %v1977 = vsel %vm1595, %v1845, 0.0
        %v1978 = vsel %vm1595, %v1847, 0.0
        %v1979 = vadd.f32 %v1977, %v1978
        %v1980 = vsel %vm1595, %v1849, 0.0
        %v1981 = vadd.f32 %v1979, %v1980
        %v1982 = vsel %vm1595, %v1851, 0.0
        %v1983 = vadd.f32 %v1981, %v1982
        %v1984 = vsel %vm1595, %v1853, 0.0
        %v1985 = vadd.f32 %v1983, %v1984
        %v1986 = vsel %vm1595, %v1855, 0.0
        %v1987 = vadd.f32 %v1985, %v1986
        %v1988 = vsel %vm1595, %v1857, 0.0
        %v1989 = vadd.f32 %v1987, %v1988
        %v1990 = vsel %vm1595, %v1859, 0.0
        %v1991 = vadd.f32 %v1989, %v1990
        %v1992 = vrot.slane %v1991, 4
        %v1993 = vadd.f32 %v1991, %v1992
        %v1994 = vrot.slane %v1993, 2
        %v1995 = vadd.f32 %v1993, %v1994
        %v1996 = vrot.slane %v1995, 1
        %v1997 = vadd.f32 %v1995, %v1996
        %v1998 = vsel %vm1595, %v1861, 0.0
        %v1999 = vsel %vm1595, %v1863, 0.0
        %v2000 = vadd.f32 %v1998, %v1999
        %v2001 = vsel %vm1595, %v1865, 0.0
        %v2002 = vadd.f32 %v2000, %v2001
        %v2003 = vsel %vm1595, %v1867, 0.0
        %v2004 = vadd.f32 %v2002, %v2003
        %v2005 = vsel %vm1595, %v1869, 0.0
        %v2006 = vadd.f32 %v2004, %v2005
        %v2007 = vsel %vm1595, %v1871, 0.0
        %v2008 = vadd.f32 %v2006, %v2007
        %v2009 = vsel %vm1595, %v1873, 0.0
        %v2010 = vadd.f32 %v2008, %v2009
        %v2011 = vsel %vm1595, %v1875, 0.0
        %v2012 = vadd.f32 %v2010, %v2011
        %v2013 = vrot.slane %v2012, 4
        %v2014 = vadd.f32 %v2012, %v2013
        %v2015 = vrot.slane %v2014, 2
        %v2016 = vadd.f32 %v2014, %v2015
        %v2017 = vrot.slane %v2016, 1
        %v2018 = vadd.f32 %v2016, %v2017
        %v2019 = vsel %vm1595, %v1877, 0.0
        %v2020 = vsel %vm1595, %v1879, 0.0
        %v2021 = vadd.f32 %v2019, %v2020
        %v2022 = vsel %vm1595, %v1881, 0.0
        %v2023 = vadd.f32 %v2021, %v2022
        %v2024 = vsel %vm1595, %v1883, 0.0
        %v2025 = vadd.f32 %v2023, %v2024
        %v2026 = vsel %vm1595, %v1885, 0.0
        %v2027 = vadd.f32 %v2025, %v2026
        %v2028 = vsel %vm1595, %v1887, 0.0
        %v2029 = vadd.f32 %v2027, %v2028
        %v2030 = vsel %vm1595, %v1889, 0.0
        %v2031 = vadd.f32 %v2029, %v2030
        %v2032 = vsel %vm1595, %v1891, 0.0
        %v2033 = vadd.f32 %v2031, %v2032
        %v2034 = vrot.slane %v2033, 4
        %v2035 = vadd.f32 %v2033, %v2034
        %v2036 = vrot.slane %v2035, 2
        %v2037 = vadd.f32 %v2035, %v2036
        %v2038 = vrot.slane %v2037, 1
        %v2039 = vadd.f32 %v2037, %v2038
        %v2040 = vsel %vm1595, %v1893, 0.0
        %v2041 = vsel %vm1595, %v1895, 0.0
        %v2042 = vadd.f32 %v2040, %v2041
        %v2043 = vsel %vm1595, %v1897, 0.0
        %v2044 = vadd.f32 %v2042, %v2043
        %v2045 = vsel %vm1595, %v1899, 0.0
        %v2046 = vadd.f32 %v2044, %v2045
        %v2047 = vsel %vm1595, %v1901, 0.0
        %v2048 = vadd.f32 %v2046, %v2047
        %v2049 = vsel %vm1595, %v1903, 0.0
        %v2050 = vadd.f32 %v2048, %v2049
        %v2051 = vsel %vm1595, %v1905, 0.0
        %v2052 = vadd.f32 %v2050, %v2051
        %v2053 = vsel %vm1595, %v1907, 0.0
        %v2054 = vadd.f32 %v2052, %v2053
        %v2055 = vrot.slane %v2054, 4
        %v2056 = vadd.f32 %v2054, %v2055
        %v2057 = vrot.slane %v2056, 2
        %v2058 = vadd.f32 %v2056, %v2057
        %v2059 = vrot.slane %v2058, 1
        %v2060 = vadd.f32 %v2058, %v2059
        %v2061 = vsel %vm1595, %v1909, 0.0
        %v2062 = vsel %vm1595, %v1911, 0.0
        %v2063 = vadd.f32 %v2061, %v2062
        %v2064 = vsel %vm1595, %v1913, 0.0
        %v2065 = vadd.f32 %v2063, %v2064
        %v2066 = vsel %vm1595, %v1915, 0.0
        %v2067 = vadd.f32 %v2065, %v2066
        %v2068 = vsel %vm1595, %v1917, 0.0
        %v2069 = vadd.f32 %v2067, %v2068
        %v2070 = vsel %vm1595, %v1919, 0.0
        %v2071 = vadd.f32 %v2069, %v2070
        %v2072 = vsel %vm1595, %v1921, 0.0
        %v2073 = vadd.f32 %v2071, %v2072
        %v2074 = vsel %vm1595, %v1923, 0.0
        %v2075 = vadd.f32 %v2073, %v2074
        %v2076 = vrot.slane %v2075, 4
        %v2077 = vadd.f32 %v2075, %v2076
        %v2078 = vrot.slane %v2077, 2
        %v2079 = vadd.f32 %v2077, %v2078
        %v2080 = vrot.slane %v2079, 1
        %v2081 = vadd.f32 %v2079, %v2080
        %v2082 = vsel %vm1595, %v1925, 0.0
        %v2083 = vsel %vm1595, %v1927, 0.0
        %v2084 = vadd.f32 %v2082, %v2083
        %v2085 = vsel %vm1595, %v1929, 0.0
        %v2086 = vadd.f32 %v2084, %v2085
        %v2087 = vsel %vm1595, %v1931, 0.0
        %v2088 = vadd.f32 %v2086, %v2087
        %v2089 = vsel %vm1595, %v1933, 0.0
        %v2090 = vadd.f32 %v2088, %v2089
        %v2091 = vsel %vm1595, %v1935, 0.0
        %v2092 = vadd.f32 %v2090, %v2091
        %v2093 = vsel %vm1595, %v1937, 0.0
        %v2094 = vadd.f32 %v2092, %v2093
        %v2095 = vsel %vm1595, %v1939, 0.0
        %v2096 = vadd.f32 %v2094, %v2095
        %v2097 = vrot.slane %v2096, 4
        %v2098 = vadd.f32 %v2096, %v2097
        %v2099 = vrot.slane %v2098, 2
        %v2100 = vadd.f32 %v2098, %v2099
        %v2101 = vrot.slane %v2100, 1
        %v2102 = vadd.f32 %v2100, %v2101
        %v2103 = vsel %vm1595, %v1941, 0.0
        %v2104 = vsel %vm1595, %v1943, 0.0
        %v2105 = vadd.f32 %v2103, %v2104
        %v2106 = vsel %vm1595, %v1945, 0.0
        %v2107 = vadd.f32 %v2105, %v2106
        %v2108 = vsel %vm1595, %v1947, 0.0
        %v2109 = vadd.f32 %v2107, %v2108
        %v2110 = vsel %vm1595, %v1949, 0.0
        %v2111 = vadd.f32 %v2109, %v2110
        %v2112 = vsel %vm1595, %v1951, 0.0
        %v2113 = vadd.f32 %v2111, %v2112
        %v2114 = vsel %vm1595, %v1953, 0.0
        %v2115 = vadd.f32 %v2113, %v2114
        %v2116 = vsel %vm1595, %v1955, 0.0
        %v2117 = vadd.f32 %v2115, %v2116
        %v2118 = vrot.slane %v2117, 4
        %v2119 = vadd.f32 %v2117, %v2118
        %v2120 = vrot.slane %v2119, 2
        %v2121 = vadd.f32 %v2119, %v2120
        %v2122 = vrot.slane %v2121, 1
        %v2123 = vadd.f32 %v2121, %v2122
        %v2124 = vrcp.pop %v1976
        %v2125 = vrcp.pop %v1997
        %v2126 = vrcp.pop %v2018
        %v2127 = vrcp.pop %v2039
        %v2128 = vrcp.pop %v2060
        %v2129 = vrcp.pop %v2081
        %v2130 = vrcp.pop %v2102
        %v2131 = vrcp.pop %v2123
        %v2132 = vmul.f32 %v1829, %v2124
        %v2133 = vmul.f32 %v1831, %v2124
        %v2134 = vmul.f32 %v1833, %v2124
        %v2135 = vmul.f32 %v1835, %v2124
        %v2136 = vmul.f32 %v1837, %v2124
        %v2137 = vmul.f32 %v1839, %v2124
        %v2138 = vmul.f32 %v1841, %v2124
        %v2139 = vmul.f32 %v1843, %v2124
        %v2140 = vmul.f32 %v1845, %v2125
        %v2141 = vmul.f32 %v1847, %v2125
        %v2142 = vmul.f32 %v1849, %v2125
        %v2143 = vmul.f32 %v1851, %v2125
        %v2144 = vmul.f32 %v1853, %v2125
        %v2145 = vmul.f32 %v1855, %v2125
        %v2146 = vmul.f32 %v1857, %v2125
        %v2147 = vmul.f32 %v1859, %v2125
        %v2148 = vmul.f32 %v1861, %v2126
        %v2149 = vmul.f32 %v1863, %v2126
        %v2150 = vmul.f32 %v1865, %v2126
        %v2151 = vmul.f32 %v1867, %v2126
        %v2152 = vmul.f32 %v1869, %v2126
        %v2153 = vmul.f32 %v1871, %v2126
        %v2154 = vmul.f32 %v1873, %v2126
        %v2155 = vmul.f32 %v1875, %v2126
        %v2156 = vmul.f32 %v1877, %v2127
        %v2157 = vmul.f32 %v1879, %v2127
        %v2158 = vmul.f32 %v1881, %v2127
        %v2159 = vmul.f32 %v1883, %v2127
        %v2160 = vmul.f32 %v1885, %v2127
        %v2161 = vmul.f32 %v1887, %v2127
        %v2162 = vmul.f32 %v1889, %v2127
        %v2163 = vmul.f32 %v1891, %v2127
        %v2164 = vmul.f32 %v1893, %v2128
        %v2165 = vmul.f32 %v1895, %v2128
        %v2166 = vmul.f32 %v1897, %v2128
        %v2167 = vmul.f32 %v1899, %v2128
        %v2168 = vmul.f32 %v1901, %v2128
        %v2169 = vmul.f32 %v1903, %v2128
        %v2170 = vmul.f32 %v1905, %v2128
        %v2171 = vmul.f32 %v1907, %v2128
        %v2172 = vmul.f32 %v1909, %v2129
        %v2173 = vmul.f32 %v1911, %v2129
        %v2174 = vmul.f32 %v1913, %v2129
        %v2175 = vmul.f32 %v1915, %v2129
        %v2176 = vmul.f32 %v1917, %v2129
        %v2177 = vmul.f32 %v1919, %v2129
        %v2178 = vmul.f32 %v1921, %v2129
        %v2179 = vmul.f32 %v1923, %v2129
        %v2180 = vmul.f32 %v1925, %v2130
        %v2181 = vmul.f32 %v1927, %v2130
        %v2182 = vmul.f32 %v1929, %v2130
        %v2183 = vmul.f32 %v1931, %v2130
        %v2184 = vmul.f32 %v1933, %v2130
        %v2185 = vmul.f32 %v1935, %v2130
        %v2186 = vmul.f32 %v1937, %v2130
        %v2187 = vmul.f32 %v1939, %v2130
        %v2188 = vmul.f32 %v1941, %v2131
        %v2189 = vmul.f32 %v1943, %v2131
        %v2190 = vmul.f32 %v1945, %v2131
        %v2191 = vmul.f32 %v1947, %v2131
        %v2192 = vmul.f32 %v1949, %v2131
        %v2193 = vmul.f32 %v1951, %v2131
        %v2194 = vmul.f32 %v1953, %v2131
        %v2195 = vmul.f32 %v1955, %v2131
        %v2196 = vld [vmem:[%s2] sm:$0xff]
        %v2198 = vsel %vm1595, %v2132, 0
        %v2201 = vsel %vm1595, %v2133, 0
        %v2204 = vsel %vm1595, %v2134, 0
        %v2207 = vsel %vm1595, %v2135, 0
        %v2210 = vsel %vm1595, %v2136, 0
        %v2213 = vsel %vm1595, %v2137, 0
        %v2216 = vsel %vm1595, %v2138, 0
        %v2219 = vsel %vm1595, %v2139, 0
        %v2222 = vsel %vm1595, %v2140, 0
        %v2225 = vsel %vm1595, %v2141, 0
        %v2228 = vsel %vm1595, %v2142, 0
        %v2231 = vsel %vm1595, %v2143, 0
        %v2234 = vsel %vm1595, %v2144, 0
        %v2237 = vsel %vm1595, %v2145, 0
        %v2240 = vsel %vm1595, %v2146, 0
        %v2243 = vsel %vm1595, %v2147, 0
        %v2246 = vsel %vm1595, %v2148, 0
        %v2249 = vsel %vm1595, %v2149, 0
        %v2252 = vsel %vm1595, %v2150, 0
        %v2255 = vsel %vm1595, %v2151, 0
        %v2258 = vsel %vm1595, %v2152, 0
        %v2261 = vsel %vm1595, %v2153, 0
        %v2264 = vsel %vm1595, %v2154, 0
        %v2267 = vsel %vm1595, %v2155, 0
        %v2270 = vsel %vm1595, %v2156, 0
        %v2273 = vsel %vm1595, %v2157, 0
        %v2276 = vsel %vm1595, %v2158, 0
        %v2279 = vsel %vm1595, %v2159, 0
        %v2282 = vsel %vm1595, %v2160, 0
        %v2285 = vsel %vm1595, %v2161, 0
        %v2288 = vsel %vm1595, %v2162, 0
        %v2291 = vsel %vm1595, %v2163, 0
        %v2294 = vsel %vm1595, %v2164, 0
        %v2297 = vsel %vm1595, %v2165, 0
        %v2300 = vsel %vm1595, %v2166, 0
        %v2303 = vsel %vm1595, %v2167, 0
        %v2306 = vsel %vm1595, %v2168, 0
        %v2309 = vsel %vm1595, %v2169, 0
        %v2312 = vsel %vm1595, %v2170, 0
        %v2315 = vsel %vm1595, %v2171, 0
        %v2318 = vsel %vm1595, %v2172, 0
        %v2321 = vsel %vm1595, %v2173, 0
        %v2324 = vsel %vm1595, %v2174, 0
        %v2327 = vsel %vm1595, %v2175, 0
        %v2330 = vsel %vm1595, %v2176, 0
        %v2333 = vsel %vm1595, %v2177, 0
        %v2336 = vsel %vm1595, %v2178, 0
        %v2339 = vsel %vm1595, %v2179, 0
        %v2342 = vsel %vm1595, %v2180, 0
        %v2345 = vsel %vm1595, %v2181, 0
        %v2348 = vsel %vm1595, %v2182, 0
        %v2351 = vsel %vm1595, %v2183, 0
        %v2354 = vsel %vm1595, %v2184, 0
        %v2357 = vsel %vm1595, %v2185, 0
        %v2360 = vsel %vm1595, %v2186, 0
        %v2363 = vsel %vm1595, %v2187, 0
        %v2366 = vsel %vm1595, %v2188, 0
        %v2369 = vsel %vm1595, %v2189, 0
        %v2372 = vsel %vm1595, %v2190, 0
        %v2375 = vsel %vm1595, %v2191, 0
        %v2378 = vsel %vm1595, %v2192, 0
        %v2381 = vsel %vm1595, %v2193, 0
        %v2384 = vsel %vm1595, %v2194, 0
        %v2387 = vsel %vm1595, %v2195, 0
        %2389 = vmatprep.subr.mxu0 0.0
        %2390 = vmatpush1.msra.mxu0 0.0
        %2391 = vmatprep.subr.mxu0 0.0
        %2392 = vmatpush1.msra.mxu0 0.0
        %2393 = vmatprep.subr.mxu0 0.0
        %2394 = vmatpush1.msra.mxu0 0.0
        %2395 = vmatprep.subr.mxu0 0.0
        %2396 = vmatpush1.msra.mxu0 0.0
        %2397 = vmatprep.subr.mxu0 0.0
        %2398 = vmatpush1.msra.mxu0 0.0
        %2399 = vmatprep.subr.mxu0 0.0
        %2400 = vmatpush1.msra.mxu0 0.0
        %2401 = vmatprep.subr.mxu0 0.0
        %2402 = vmatpush1.msra.mxu0 0.0
        %2403 = vmatprep.subr.mxu0 0.0
        %2404 = vmatpush1.msra.mxu0 0.0
        %2405 = vmatprep.subr.mxu0 0.0
        %2406 = vmatpush1.msra.mxu0 0.0
        %2407 = vmatprep.subr.mxu0 0.0
        %2408 = vmatpush1.msra.mxu0 0.0
        %2409 = vmatprep.subr.mxu0 0.0
        %2410 = vmatpush1.msra.mxu0 0.0
        %2411 = vmatprep.subr.mxu0 0.0
        %2412 = vmatpush1.msra.mxu0 0.0
        %2413 = vmatprep.subr.mxu0 0.0
        %2414 = vmatpush1.msra.mxu0 0.0
        %2415 = vmatprep.subr.mxu0 0.0
        %2416 = vmatpush1.msra.mxu0 0.0
        %2417 = vmatprep.subr.mxu0 0.0
        %2418 = vmatpush1.msra.mxu0 0.0
        %2419 = vmatprep.subr.mxu0 0.0
        %2420 = vmatpush1.msra.mxu0 %v2196
        %2421 = vmatprep.subr.mxu0 0.0
        %2422 = vmatpush2.msra.mxu0 0.0
        %2423 = vmatprep.subr.mxu0 0.0
        %2424 = vmatpush2.msra.mxu0 0.0
        %2425 = vmatprep.subr.mxu0 0.0
        %2426 = vmatpush2.msra.mxu0 0.0
        %2427 = vmatprep.subr.mxu0 0.0
        %2428 = vmatpush2.msra.mxu0 0.0
        %2429 = vmatprep.subr.mxu0 0.0
        %2430 = vmatpush2.msra.mxu0 0.0
        %2431 = vmatprep.subr.mxu0 0.0
        %2432 = vmatpush2.msra.mxu0 0.0
        %2433 = vmatprep.subr.mxu0 0.0
        %2434 = vmatpush2.msra.mxu0 0.0
        %2435 = vmatprep.subr.mxu0 0.0
        %2436 = vmatpush2.msra.mxu0 0.0
        %2437 = vmatprep.subr.mxu0 0.0
        %2438 = vmatpush2.msra.mxu0 0.0
        %2439 = vmatprep.subr.mxu0 0.0
        %2440 = vmatpush2.msra.mxu0 0.0
        %2441 = vmatprep.subr.mxu0 0.0
        %2442 = vmatpush2.msra.mxu0 0.0
        %2443 = vmatprep.subr.mxu0 0.0
        %2444 = vmatpush2.msra.mxu0 0.0
        %2445 = vmatprep.subr.mxu0 0.0
        %2446 = vmatpush2.msra.mxu0 0.0
        %2447 = vmatprep.subr.mxu0 0.0
        %2448 = vmatpush2.msra.mxu0 0.0
        %2449 = vmatprep.subr.mxu0 0.0
        %2450 = vmatpush2.msra.mxu0 0.0
        %2451 = vmatprep.subr.mxu0 0.0
        %2452 = vmatpush2.msra.mxu0 0.0
        %2453 = vmatprep.mubr.f32.mxu0 0.0
        %2454 = vmatmul.mubr.f32.gmra.mxu0 %v2198
        %v2455 = vpop.f32.mrf.mxu0
        %v2456 = vadd.f32 0.0, %v2455
        %v2457 = vpop.f32.mrf.mxu0
        %2458 = vmatprep.mubr.f32.mxu0 0.0
        %2459 = vmatmul.mubr.f32.gmra.mxu0 %v2201
        %v2460 = vpop.f32.mrf.mxu0
        %v2461 = vadd.f32 0.0, %v2460
        %v2462 = vpop.f32.mrf.mxu0
        %2463 = vmatprep.mubr.f32.mxu0 0.0
        %2464 = vmatmul.mubr.f32.gmra.mxu0 %v2204
        %v2465 = vpop.f32.mrf.mxu0
        %v2466 = vadd.f32 0.0, %v2465
        %v2467 = vpop.f32.mrf.mxu0
        %2468 = vmatprep.mubr.f32.mxu0 0.0
        %2469 = vmatmul.mubr.f32.gmra.mxu0 %v2207
        %v2470 = vpop.f32.mrf.mxu0
        %v2471 = vadd.f32 0.0, %v2470
        %v2472 = vpop.f32.mrf.mxu0
        %2473 = vmatprep.mubr.f32.mxu0 0.0
        %2474 = vmatmul.mubr.f32.gmra.mxu0 %v2210
        %v2475 = vpop.f32.mrf.mxu0
        %v2476 = vadd.f32 0.0, %v2475
        %v2477 = vpop.f32.mrf.mxu0
        %2478 = vmatprep.mubr.f32.mxu0 0.0
        %2479 = vmatmul.mubr.f32.gmra.mxu0 %v2213
        %v2480 = vpop.f32.mrf.mxu0
        %v2481 = vadd.f32 0.0, %v2480
        %v2482 = vpop.f32.mrf.mxu0
        %2483 = vmatprep.mubr.f32.mxu0 0.0
        %2484 = vmatmul.mubr.f32.gmra.mxu0 %v2216
        %v2485 = vpop.f32.mrf.mxu0
        %v2486 = vadd.f32 0.0, %v2485
        %v2487 = vpop.f32.mrf.mxu0
        %2488 = vmatprep.mubr.f32.mxu0 0.0
        %2489 = vmatmul.mubr.f32.gmra.mxu0 %v2219
        %v2490 = vpop.f32.mrf.mxu0
        %v2491 = vadd.f32 0.0, %v2490
        %v2492 = vpop.f32.mrf.mxu0
        %2493 = vmatprep.mubr.f32.mxu0 0.0
        %2494 = vmatmul.mubr.f32.gmra.mxu0 %v2222
        %v2495 = vpop.f32.mrf.mxu0
        %v2496 = vadd.f32 0.0, %v2495
        %v2497 = vpop.f32.mrf.mxu0
        %2498 = vmatprep.mubr.f32.mxu0 0.0
        %2499 = vmatmul.mubr.f32.gmra.mxu0 %v2225
        %v2500 = vpop.f32.mrf.mxu0
        %v2501 = vadd.f32 0.0, %v2500
        %v2502 = vpop.f32.mrf.mxu0
        %2503 = vmatprep.mubr.f32.mxu0 0.0
        %2504 = vmatmul.mubr.f32.gmra.mxu0 %v2228
        %v2505 = vpop.f32.mrf.mxu0
        %v2506 = vadd.f32 0.0, %v2505
        %v2507 = vpop.f32.mrf.mxu0
        %2508 = vmatprep.mubr.f32.mxu0 0.0
        %2509 = vmatmul.mubr.f32.gmra.mxu0 %v2231
        %v2510 = vpop.f32.mrf.mxu0
        %v2511 = vadd.f32 0.0, %v2510
        %v2512 = vpop.f32.mrf.mxu0
        %2513 = vmatprep.mubr.f32.mxu0 0.0
        %2514 = vmatmul.mubr.f32.gmra.mxu0 %v2234
        %v2515 = vpop.f32.mrf.mxu0
        %v2516 = vadd.f32 0.0, %v2515
        %v2517 = vpop.f32.mrf.mxu0
        %2518 = vmatprep.mubr.f32.mxu0 0.0
        %2519 = vmatmul.mubr.f32.gmra.mxu0 %v2237
        %v2520 = vpop.f32.mrf.mxu0
        %v2521 = vadd.f32 0.0, %v2520
        %v2522 = vpop.f32.mrf.mxu0
        %2523 = vmatprep.mubr.f32.mxu0 0.0
        %2524 = vmatmul.mubr.f32.gmra.mxu0 %v2240
        %v2525 = vpop.f32.mrf.mxu0
        %v2526 = vadd.f32 0.0, %v2525
        %v2527 = vpop.f32.mrf.mxu0
        %2528 = vmatprep.mubr.f32.mxu0 0.0
        %2529 = vmatmul.mubr.f32.gmra.mxu0 %v2243
        %v2530 = vpop.f32.mrf.mxu0
        %v2531 = vadd.f32 0.0, %v2530
        %v2532 = vpop.f32.mrf.mxu0
        %2533 = vmatprep.mubr.f32.mxu0 0.0
        %2534 = vmatmul.mubr.f32.gmra.mxu0 %v2246
        %v2535 = vpop.f32.mrf.mxu0
        %v2536 = vadd.f32 0.0, %v2535
        %v2537 = vpop.f32.mrf.mxu0
        %2538 = vmatprep.mubr.f32.mxu0 0.0
        %2539 = vmatmul.mubr.f32.gmra.mxu0 %v2249
        %v2540 = vpop.f32.mrf.mxu0
        %v2541 = vadd.f32 0.0, %v2540
        %v2542 = vpop.f32.mrf.mxu0
        %2543 = vmatprep.mubr.f32.mxu0 0.0
        %2544 = vmatmul.mubr.f32.gmra.mxu0 %v2252
        %v2545 = vpop.f32.mrf.mxu0
        %v2546 = vadd.f32 0.0, %v2545
        %v2547 = vpop.f32.mrf.mxu0
        %2548 = vmatprep.mubr.f32.mxu0 0.0
        %2549 = vmatmul.mubr.f32.gmra.mxu0 %v2255
        %v2550 = vpop.f32.mrf.mxu0
        %v2551 = vadd.f32 0.0, %v2550
        %v2552 = vpop.f32.mrf.mxu0
        %2553 = vmatprep.mubr.f32.mxu0 0.0
        %2554 = vmatmul.mubr.f32.gmra.mxu0 %v2258
        %v2555 = vpop.f32.mrf.mxu0
        %v2556 = vadd.f32 0.0, %v2555
        %v2557 = vpop.f32.mrf.mxu0
        %2558 = vmatprep.mubr.f32.mxu0 0.0
        %2559 = vmatmul.mubr.f32.gmra.mxu0 %v2261
        %v2560 = vpop.f32.mrf.mxu0
        %v2561 = vadd.f32 0.0, %v2560
        %v2562 = vpop.f32.mrf.mxu0
        %2563 = vmatprep.mubr.f32.mxu0 0.0
        %2564 = vmatmul.mubr.f32.gmra.mxu0 %v2264
        %v2565 = vpop.f32.mrf.mxu0
        %v2566 = vadd.f32 0.0, %v2565
        %v2567 = vpop.f32.mrf.mxu0
        %2568 = vmatprep.mubr.f32.mxu0 0.0
        %2569 = vmatmul.mubr.f32.gmra.mxu0 %v2267
        %v2570 = vpop.f32.mrf.mxu0
        %v2571 = vadd.f32 0.0, %v2570
        %v2572 = vpop.f32.mrf.mxu0
        %2573 = vmatprep.mubr.f32.mxu0 0.0
        %2574 = vmatmul.mubr.f32.gmra.mxu0 %v2270
        %v2575 = vpop.f32.mrf.mxu0
        %v2576 = vadd.f32 0.0, %v2575
        %v2577 = vpop.f32.mrf.mxu0
        %2578 = vmatprep.mubr.f32.mxu0 0.0
        %2579 = vmatmul.mubr.f32.gmra.mxu0 %v2273
        %v2580 = vpop.f32.mrf.mxu0
        %v2581 = vadd.f32 0.0, %v2580
        %v2582 = vpop.f32.mrf.mxu0
        %2583 = vmatprep.mubr.f32.mxu0 0.0
        %2584 = vmatmul.mubr.f32.gmra.mxu0 %v2276
        %v2585 = vpop.f32.mrf.mxu0
        %v2586 = vadd.f32 0.0, %v2585
        %v2587 = vpop.f32.mrf.mxu0
        %2588 = vmatprep.mubr.f32.mxu0 0.0
        %2589 = vmatmul.mubr.f32.gmra.mxu0 %v2279
        %v2590 = vpop.f32.mrf.mxu0
        %v2591 = vadd.f32 0.0, %v2590
        %v2592 = vpop.f32.mrf.mxu0
        %2593 = vmatprep.mubr.f32.mxu0 0.0
        %2594 = vmatmul.mubr.f32.gmra.mxu0 %v2282
        %v2595 = vpop.f32.mrf.mxu0
        %v2596 = vadd.f32 0.0, %v2595
        %v2597 = vpop.f32.mrf.mxu0
        %2598 = vmatprep.mubr.f32.mxu0 0.0
        %2599 = vmatmul.mubr.f32.gmra.mxu0 %v2285
        %v2600 = vpop.f32.mrf.mxu0
        %v2601 = vadd.f32 0.0, %v2600
        %v2602 = vpop.f32.mrf.mxu0
        %2603 = vmatprep.mubr.f32.mxu0 0.0
        %2604 = vmatmul.mubr.f32.gmra.mxu0 %v2288
        %v2605 = vpop.f32.mrf.mxu0
        %v2606 = vadd.f32 0.0, %v2605
        %v2607 = vpop.f32.mrf.mxu0
        %2608 = vmatprep.mubr.f32.mxu0 0.0
        %2609 = vmatmul.mubr.f32.gmra.mxu0 %v2291
        %v2610 = vpop.f32.mrf.mxu0
        %v2611 = vadd.f32 0.0, %v2610
        %v2612 = vpop.f32.mrf.mxu0
        %2613 = vmatprep.mubr.f32.mxu0 0.0
        %2614 = vmatmul.mubr.f32.gmra.mxu0 %v2294
        %v2615 = vpop.f32.mrf.mxu0
        %v2616 = vadd.f32 0.0, %v2615
        %v2617 = vpop.f32.mrf.mxu0
        %2618 = vmatprep.mubr.f32.mxu0 0.0
        %2619 = vmatmul.mubr.f32.gmra.mxu0 %v2297
        %v2620 = vpop.f32.mrf.mxu0
        %v2621 = vadd.f32 0.0, %v2620
        %v2622 = vpop.f32.mrf.mxu0
        %2623 = vmatprep.mubr.f32.mxu0 0.0
        %2624 = vmatmul.mubr.f32.gmra.mxu0 %v2300
        %v2625 = vpop.f32.mrf.mxu0
        %v2626 = vadd.f32 0.0, %v2625
        %v2627 = vpop.f32.mrf.mxu0
        %2628 = vmatprep.mubr.f32.mxu0 0.0
        %2629 = vmatmul.mubr.f32.gmra.mxu0 %v2303
        %v2630 = vpop.f32.mrf.mxu0
        %v2631 = vadd.f32 0.0, %v2630
        %v2632 = vpop.f32.mrf.mxu0
        %2633 = vmatprep.mubr.f32.mxu0 0.0
        %2634 = vmatmul.mubr.f32.gmra.mxu0 %v2306
        %v2635 = vpop.f32.mrf.mxu0
        %v2636 = vadd.f32 0.0, %v2635
        %v2637 = vpop.f32.mrf.mxu0
        %2638 = vmatprep.mubr.f32.mxu0 0.0
        %2639 = vmatmul.mubr.f32.gmra.mxu0 %v2309
        %v2640 = vpop.f32.mrf.mxu0
        %v2641 = vadd.f32 0.0, %v2640
        %v2642 = vpop.f32.mrf.mxu0
        %2643 = vmatprep.mubr.f32.mxu0 0.0
        %2644 = vmatmul.mubr.f32.gmra.mxu0 %v2312
        %v2645 = vpop.f32.mrf.mxu0
        %v2646 = vadd.f32 0.0, %v2645
        %v2647 = vpop.f32.mrf.mxu0
        %2648 = vmatprep.mubr.f32.mxu0 0.0
        %2649 = vmatmul.mubr.f32.gmra.mxu0 %v2315
        %v2650 = vpop.f32.mrf.mxu0
        %v2651 = vadd.f32 0.0, %v2650
        %v2652 = vpop.f32.mrf.mxu0
        %2653 = vmatprep.mubr.f32.mxu0 0.0
        %2654 = vmatmul.mubr.f32.gmra.mxu0 %v2318
        %v2655 = vpop.f32.mrf.mxu0
        %v2656 = vadd.f32 0.0, %v2655
        %v2657 = vpop.f32.mrf.mxu0
        %2658 = vmatprep.mubr.f32.mxu0 0.0
        %2659 = vmatmul.mubr.f32.gmra.mxu0 %v2321
        %v2660 = vpop.f32.mrf.mxu0
        %v2661 = vadd.f32 0.0, %v2660
        %v2662 = vpop.f32.mrf.mxu0
        %2663 = vmatprep.mubr.f32.mxu0 0.0
        %2664 = vmatmul.mubr.f32.gmra.mxu0 %v2324
        %v2665 = vpop.f32.mrf.mxu0
        %v2666 = vadd.f32 0.0, %v2665
        %v2667 = vpop.f32.mrf.mxu0
        %2668 = vmatprep.mubr.f32.mxu0 0.0
        %2669 = vmatmul.mubr.f32.gmra.mxu0 %v2327
        %v2670 = vpop.f32.mrf.mxu0
        %v2671 = vadd.f32 0.0, %v2670
        %v2672 = vpop.f32.mrf.mxu0
        %2673 = vmatprep.mubr.f32.mxu0 0.0
        %2674 = vmatmul.mubr.f32.gmra.mxu0 %v2330
        %v2675 = vpop.f32.mrf.mxu0
        %v2676 = vadd.f32 0.0, %v2675
        %v2677 = vpop.f32.mrf.mxu0
        %2678 = vmatprep.mubr.f32.mxu0 0.0
        %2679 = vmatmul.mubr.f32.gmra.mxu0 %v2333
        %v2680 = vpop.f32.mrf.mxu0
        %v2681 = vadd.f32 0.0, %v2680
        %v2682 = vpop.f32.mrf.mxu0
        %2683 = vmatprep.mubr.f32.mxu0 0.0
        %2684 = vmatmul.mubr.f32.gmra.mxu0 %v2336
        %v2685 = vpop.f32.mrf.mxu0
        %v2686 = vadd.f32 0.0, %v2685
        %v2687 = vpop.f32.mrf.mxu0
        %2688 = vmatprep.mubr.f32.mxu0 0.0
        %2689 = vmatmul.mubr.f32.gmra.mxu0 %v2339
        %v2690 = vpop.f32.mrf.mxu0
        %v2691 = vadd.f32 0.0, %v2690
        %v2692 = vpop.f32.mrf.mxu0
        %2693 = vmatprep.mubr.f32.mxu0 0.0
        %2694 = vmatmul.mubr.f32.gmra.mxu0 %v2342
        %v2695 = vpop.f32.mrf.mxu0
        %v2696 = vadd.f32 0.0, %v2695
        %v2697 = vpop.f32.mrf.mxu0
        %2698 = vmatprep.mubr.f32.mxu0 0.0
        %2699 = vmatmul.mubr.f32.gmra.mxu0 %v2345
        %v2700 = vpop.f32.mrf.mxu0
        %v2701 = vadd.f32 0.0, %v2700
        %v2702 = vpop.f32.mrf.mxu0
        %2703 = vmatprep.mubr.f32.mxu0 0.0
        %2704 = vmatmul.mubr.f32.gmra.mxu0 %v2348
        %v2705 = vpop.f32.mrf.mxu0
        %v2706 = vadd.f32 0.0, %v2705
        %v2707 = vpop.f32.mrf.mxu0
        %2708 = vmatprep.mubr.f32.mxu0 0.0
        %2709 = vmatmul.mubr.f32.gmra.mxu0 %v2351
        %v2710 = vpop.f32.mrf.mxu0
        %v2711 = vadd.f32 0.0, %v2710
        %v2712 = vpop.f32.mrf.mxu0
        %2713 = vmatprep.mubr.f32.mxu0 0.0
        %2714 = vmatmul.mubr.f32.gmra.mxu0 %v2354
        %v2715 = vpop.f32.mrf.mxu0
        %v2716 = vadd.f32 0.0, %v2715
        %v2717 = vpop.f32.mrf.mxu0
        %2718 = vmatprep.mubr.f32.mxu0 0.0
        %2719 = vmatmul.mubr.f32.gmra.mxu0 %v2357
        %v2720 = vpop.f32.mrf.mxu0
        %v2721 = vadd.f32 0.0, %v2720
        %v2722 = vpop.f32.mrf.mxu0
        %2723 = vmatprep.mubr.f32.mxu0 0.0
        %2724 = vmatmul.mubr.f32.gmra.mxu0 %v2360
        %v2725 = vpop.f32.mrf.mxu0
        %v2726 = vadd.f32 0.0, %v2725
        %v2727 = vpop.f32.mrf.mxu0
        %2728 = vmatprep.mubr.f32.mxu0 0.0
        %2729 = vmatmul.mubr.f32.gmra.mxu0 %v2363
        %v2730 = vpop.f32.mrf.mxu0
        %v2731 = vadd.f32 0.0, %v2730
        %v2732 = vpop.f32.mrf.mxu0
        %2733 = vmatprep.mubr.f32.mxu0 0.0
        %2734 = vmatmul.mubr.f32.gmra.mxu0 %v2366
        %v2735 = vpop.f32.mrf.mxu0
        %v2736 = vadd.f32 0.0, %v2735
        %v2737 = vpop.f32.mrf.mxu0
        %2738 = vmatprep.mubr.f32.mxu0 0.0
        %2739 = vmatmul.mubr.f32.gmra.mxu0 %v2369
        %v2740 = vpop.f32.mrf.mxu0
        %v2741 = vadd.f32 0.0, %v2740
        %v2742 = vpop.f32.mrf.mxu0
        %2743 = vmatprep.mubr.f32.mxu0 0.0
        %2744 = vmatmul.mubr.f32.gmra.mxu0 %v2372
        %v2745 = vpop.f32.mrf.mxu0
        %v2746 = vadd.f32 0.0, %v2745
        %v2747 = vpop.f32.mrf.mxu0
        %2748 = vmatprep.mubr.f32.mxu0 0.0
        %2749 = vmatmul.mubr.f32.gmra.mxu0 %v2375
        %v2750 = vpop.f32.mrf.mxu0
        %v2751 = vadd.f32 0.0, %v2750
        %v2752 = vpop.f32.mrf.mxu0
        %2753 = vmatprep.mubr.f32.mxu0 0.0
        %2754 = vmatmul.mubr.f32.gmra.mxu0 %v2378
        %v2755 = vpop.f32.mrf.mxu0
        %v2756 = vadd.f32 0.0, %v2755
        %v2757 = vpop.f32.mrf.mxu0
        %2758 = vmatprep.mubr.f32.mxu0 0.0
        %2759 = vmatmul.mubr.f32.gmra.mxu0 %v2381
        %v2760 = vpop.f32.mrf.mxu0
        %v2761 = vadd.f32 0.0, %v2760
        %v2762 = vpop.f32.mrf.mxu0
        %2763 = vmatprep.mubr.f32.mxu0 0.0
        %2764 = vmatmul.mubr.f32.gmra.mxu0 %v2384
        %v2765 = vpop.f32.mrf.mxu0
        %v2766 = vadd.f32 0.0, %v2765
        %v2767 = vpop.f32.mrf.mxu0
        %2768 = vmatprep.mubr.f32.mxu0 0.0
        %2769 = vmatmul.mubr.f32.gmra.mxu0 %v2387
        %v2770 = vpop.f32.mrf.mxu0
        %v2771 = vadd.f32 0.0, %v2770
        %v2772 = vpop.f32.mrf.mxu0
        %2773 = vdwg.mxu0
        %v2774 = vmul.f32 %v2456, %v876
        %v2775 = vmul.f32 %v2461, %v881
        %v2776 = vmul.f32 %v2466, %v886
        %v2777 = vmul.f32 %v2471, %v891
        %v2778 = vmul.f32 %v2476, %v896
        %v2779 = vmul.f32 %v2481, %v901
        %v2780 = vmul.f32 %v2486, %v906
        %v2781 = vmul.f32 %v2491, %v911
        %v2782 = vmul.f32 %v2496, %v916
        %v2783 = vmul.f32 %v2501, %v921
        %v2784 = vmul.f32 %v2506, %v926
        %v2785 = vmul.f32 %v2511, %v931
        %v2786 = vmul.f32 %v2516, %v936
        %v2787 = vmul.f32 %v2521, %v941
        %v2788 = vmul.f32 %v2526, %v946
        %v2789 = vmul.f32 %v2531, %v951
        %v2790 = vmul.f32 %v2536, %v956
        %v2791 = vmul.f32 %v2541, %v961
        %v2792 = vmul.f32 %v2546, %v966
        %v2793 = vmul.f32 %v2551, %v971
        %v2794 = vmul.f32 %v2556, %v976
        %v2795 = vmul.f32 %v2561, %v981
        %v2796 = vmul.f32 %v2566, %v986
        %v2797 = vmul.f32 %v2571, %v991
        %v2798 = vmul.f32 %v2576, %v996
        %v2799 = vmul.f32 %v2581, %v1001
        %v2800 = vmul.f32 %v2586, %v1006
        %v2801 = vmul.f32 %v2591, %v1011
        %v2802 = vmul.f32 %v2596, %v1016
        %v2803 = vmul.f32 %v2601, %v1021
        %v2804 = vmul.f32 %v2606, %v1026
        %v2805 = vmul.f32 %v2611, %v1031
        %v2806 = vmul.f32 %v2616, %v1036
        %v2807 = vmul.f32 %v2621, %v1041
        %v2808 = vmul.f32 %v2626, %v1046
        %v2809 = vmul.f32 %v2631, %v1051
        %v2810 = vmul.f32 %v2636, %v1056
        %v2811 = vmul.f32 %v2641, %v1061
        %v2812 = vmul.f32 %v2646, %v1066
        %v2813 = vmul.f32 %v2651, %v1071
        %v2814 = vmul.f32 %v2656, %v1076
        %v2815 = vmul.f32 %v2661, %v1081
        %v2816 = vmul.f32 %v2666, %v1086
        %v2817 = vmul.f32 %v2671, %v1091
        %v2818 = vmul.f32 %v2676, %v1096
        %v2819 = vmul.f32 %v2681, %v1101
        %v2820 = vmul.f32 %v2686, %v1106
        %v2821 = vmul.f32 %v2691, %v1111
        %v2822 = vmul.f32 %v2696, %v1116
        %v2823 = vmul.f32 %v2701, %v1121
        %v2824 = vmul.f32 %v2706, %v1126
        %v2825 = vmul.f32 %v2711, %v1131
        %v2826 = vmul.f32 %v2716, %v1136
        %v2827 = vmul.f32 %v2721, %v1141
        %v2828 = vmul.f32 %v2726, %v1146
        %v2829 = vmul.f32 %v2731, %v1151
        %v2830 = vmul.f32 %v2736, %v1156
        %v2831 = vmul.f32 %v2741, %v1161
        %v2832 = vmul.f32 %v2746, %v1166
        %v2833 = vmul.f32 %v2751, %v1171
        %v2834 = vmul.f32 %v2756, %v1176
        %v2835 = vmul.f32 %v2761, %v1181
        %v2836 = vmul.f32 %v2766, %v1186
        %v2837 = vmul.f32 %v2771, %v1191
        %v2838 = vadd.f32 %v2774, %v2775
        %v2839 = vadd.f32 %v2838, %v2776
        %v2840 = vadd.f32 %v2839, %v2777
        %v2841 = vadd.f32 %v2840, %v2778
        %v2842 = vadd.f32 %v2841, %v2779
        %v2843 = vadd.f32 %v2842, %v2780
        %v2844 = vadd.f32 %v2843, %v2781
        %v2845 = vrot.slane %v2844, 4
        %v2846 = vadd.f32 %v2844, %v2845
        %v2847 = vrot.slane %v2846, 2
        %v2848 = vadd.f32 %v2846, %v2847
        %v2849 = vrot.slane %v2848, 1
        %v2850 = vadd.f32 %v2848, %v2849
        %v2851 = vadd.f32 %v2782, %v2783
        %v2852 = vadd.f32 %v2851, %v2784
        %v2853 = vadd.f32 %v2852, %v2785
        %v2854 = vadd.f32 %v2853, %v2786
        %v2855 = vadd.f32 %v2854, %v2787
        %v2856 = vadd.f32 %v2855, %v2788
        %v2857 = vadd.f32 %v2856, %v2789
        %v2858 = vrot.slane %v2857, 4
        %v2859 = vadd.f32 %v2857, %v2858
        %v2860 = vrot.slane %v2859, 2
        %v2861 = vadd.f32 %v2859, %v2860
        %v2862 = vrot.slane %v2861, 1
        %v2863 = vadd.f32 %v2861, %v2862
        %v2864 = vadd.f32 %v2790, %v2791
        %v2865 = vadd.f32 %v2864, %v2792
        %v2866 = vadd.f32 %v2865, %v2793
        %v2867 = vadd.f32 %v2866, %v2794
        %v2868 = vadd.f32 %v2867, %v2795
        %v2869 = vadd.f32 %v2868, %v2796
        %v2870 = vadd.f32 %v2869, %v2797
        %v2871 = vrot.slane %v2870, 4
        %v2872 = vadd.f32 %v2870, %v2871
        %v2873 = vrot.slane %v2872, 2
        %v2874 = vadd.f32 %v2872, %v2873
        %v2875 = vrot.slane %v2874, 1
        %v2876 = vadd.f32 %v2874, %v2875
        %v2877 = vadd.f32 %v2798, %v2799
        %v2878 = vadd.f32 %v2877, %v2800
        %v2879 = vadd.f32 %v2878, %v2801
        %v2880 = vadd.f32 %v2879, %v2802
        %v2881 = vadd.f32 %v2880, %v2803
        %v2882 = vadd.f32 %v2881, %v2804
        %v2883 = vadd.f32 %v2882, %v2805
        %v2884 = vrot.slane %v2883, 4
        %v2885 = vadd.f32 %v2883, %v2884
        %v2886 = vrot.slane %v2885, 2
        %v2887 = vadd.f32 %v2885, %v2886
        %v2888 = vrot.slane %v2887, 1
        %v2889 = vadd.f32 %v2887, %v2888
        %v2890 = vadd.f32 %v2806, %v2807
        %v2891 = vadd.f32 %v2890, %v2808
        %v2892 = vadd.f32 %v2891, %v2809
        %v2893 = vadd.f32 %v2892, %v2810
        %v2894 = vadd.f32 %v2893, %v2811
        %v2895 = vadd.f32 %v2894, %v2812
        %v2896 = vadd.f32 %v2895, %v2813
        %v2897 = vrot.slane %v2896, 4
        %v2898 = vadd.f32 %v2896, %v2897
        %v2899 = vrot.slane %v2898, 2
        %v2900 = vadd.f32 %v2898, %v2899
        %v2901 = vrot.slane %v2900, 1
        %v2902 = vadd.f32 %v2900, %v2901
        %v2903 = vadd.f32 %v2814, %v2815
        %v2904 = vadd.f32 %v2903, %v2816
        %v2905 = vadd.f32 %v2904, %v2817
        %v2906 = vadd.f32 %v2905, %v2818
        %v2907 = vadd.f32 %v2906, %v2819
        %v2908 = vadd.f32 %v2907, %v2820
        %v2909 = vadd.f32 %v2908, %v2821
        %v2910 = vrot.slane %v2909, 4
        %v2911 = vadd.f32 %v2909, %v2910
        %v2912 = vrot.slane %v2911, 2
        %v2913 = vadd.f32 %v2911, %v2912
        %v2914 = vrot.slane %v2913, 1
        %v2915 = vadd.f32 %v2913, %v2914
        %v2916 = vadd.f32 %v2822, %v2823
        %v2917 = vadd.f32 %v2916, %v2824
        %v2918 = vadd.f32 %v2917, %v2825
        %v2919 = vadd.f32 %v2918, %v2826
        %v2920 = vadd.f32 %v2919, %v2827
        %v2921 = vadd.f32 %v2920, %v2828
        %v2922 = vadd.f32 %v2921, %v2829
        %v2923 = vrot.slane %v2922, 4
        %v2924 = vadd.f32 %v2922, %v2923
        %v2925 = vrot.slane %v2924, 2
        %v2926 = vadd.f32 %v2924, %v2925
        %v2927 = vrot.slane %v2926, 1
        %v2928 = vadd.f32 %v2926, %v2927
        %v2929 = vadd.f32 %v2830, %v2831
        %v2930 = vadd.f32 %v2929, %v2832
        %v2931 = vadd.f32 %v2930, %v2833
        %v2932 = vadd.f32 %v2931, %v2834
        %v2933 = vadd.f32 %v2932, %v2835
        %v2934 = vadd.f32 %v2933, %v2836
        %v2935 = vadd.f32 %v2934, %v2837
        %v2936 = vrot.slane %v2935, 4
        %v2937 = vadd.f32 %v2935, %v2936
        %v2938 = vrot.slane %v2937, 2
        %v2939 = vadd.f32 %v2937, %v2938
        %v2940 = vrot.slane %v2939, 1
        %v2941 = vadd.f32 %v2939, %v2940
        %vm2950 = vcmask 1041409
        %v2951 = vsel %vm2950, %v2863, %v2850
        %vm2952 = vcmask 1042434
        %v2953 = vsel %vm2952, %v2876, %v2951
        %vm2954 = vcmask 1043459
        %v2955 = vsel %vm2954, %v2889, %v2953
        %vm2956 = vcmask 1044484
        %v2957 = vsel %vm2956, %v2902, %v2955
        %vm2958 = vcmask 1045509
        %v2959 = vsel %vm2958, %v2915, %v2957
        %vm2960 = vcmask 1046534
        %v2961 = vsel %vm2960, %v2928, %v2959
        %vm2962 = vcmask 1047559
        %v2963 = vsel %vm2962, %v2941, %v2961
        %2965 = vst [vmem:[%s312] sm:$0xff] %v2963
        %s2966 = sand.u32 %s185, 1
        %s2967 = scalar_lea.sflag [#allocation4], %s2966
        %s2968 = sand.u32 %s185, 1
        %s2969 = smul.addr %s2968, 8
        %s2970 = scalar_lea.vmem [#allocation7], %s2969
        // Predicated region
        $region57: #{tpu_custom_call.1} parent=47 // pred_check
          %p2971 = pneg %p195
        $region58: #{tpu_custom_call.1} parent=47 // pred_check_branch
          %2973 = sbr.rel (%p2971) target = $region60
        $region59: #{tpu_custom_call.1} parent=47 // pred_region
          %s2975 = ssub.s32 128, 128
          %2976 = vsyncadd %s2967, %s2975
          %s2977 = smul.addr %s25, 128
          %s2978 = scalar_lea.hbm %s7, %s2977
          %s2980 = sshll.u32 %s2970, 4
          %s2981 = int_to_ptr.vmem [resolvable:$true] %s2980
          %2983 = dma.vmem_to_hbm [thread:$0]  %s2981, 128, %s2978, %s2967
        $region60: #{tpu_custom_call.1} parent=47 // pred_fallthru
          _
      $region48: #{tpu_custom_call.1} parent=5 // pred_fallthru
        _
      %p2984 = scmp.le.s32.totalorder 2, %s20
      // Predicated region
      $region61: #{tpu_custom_call.1} parent=5 // pred_check
        %p2985 = pneg %p2984
      $region62: #{tpu_custom_call.1} parent=5 // pred_check_branch
        %2987 = sbr.rel (%p2985) target = $region64
      $region63: #{tpu_custom_call.1} parent=5 // pred_region
        %s2988 = ssub.s32 %s20, 2
        // Predicated region
        $region65: #{tpu_custom_call.1} parent=63 // pred_check
          %p2989 = pneg %p201
        $region66: #{tpu_custom_call.1} parent=63 // pred_check_branch
          %2991 = sbr.rel (%p2989) target = $region68
        $region67: #{tpu_custom_call.1} parent=63 // pred_region
          %s2992 = sand.u32 %s186, 1
          %s2993 = scalar_lea.sflag [#allocation4], %s2992
          %s2994 = sand.u32 %s186, 1
          %s2995 = smul.addr %s2994, 8
          %s2996 = scalar_lea.vmem [#allocation7], %s2995
          %2997 = dma.done %s2993, 128
        $region68: #{tpu_custom_call.1} parent=63 // pred_fallthru
          _
      $region64: #{tpu_custom_call.1} parent=5 // pred_fallthru
        _
    $region6: #{tpu_custom_call.1} parent=1 // loop_footer
      %s24 = sadd.s32 1, %s20
    $region7: #{tpu_custom_call.1} parent=1 // loop_footer_branch
      %19 = sbr.rel target = $region3
    $region8: #{tpu_custom_call.1} parent=1 // loop_exit
      _
    %2998 = vsyncpa [#allocation3], 1
    %s2999 = scalar_lea.sflag [#allocation3], 1
    %3000 = vsyncpa %s2999, 1
    %3001 = vsyncpa [#allocation6], 1
    %3002 = vsyncpa [#allocation4], 1
    %s3003 = scalar_lea.sflag [#allocation4], 1
    %3004 = vsyncpa %s3003, 1

</llo_original>
